<compile_context>
chip_gen: v5e
topology: v5e:2x2
jax: 0.10.0
libtpu: 0.0.40
codegen_flags: <defaults>
</compile_context>

<pallas_src>
import jax
import jax.numpy as jnp
from jax.experimental import pallas as pl
from jax.experimental.pallas import tpu as pltpu

_KSIZE = 3
_STRIDE = 2
_PAD = 1


# ----------------------------------------------------------------------------
# Fused kernel
# ----------------------------------------------------------------------------
def _make_fused_kernel(num_stages, n_batch, stage_hos):
    """Builds the fused multi-stage conv+ReLU kernel (all stages in one call).

    Ref layout (positional): x, (w_s, b_s) per stage, per-stage outputs,
    then (num_stages - 1) VMEM scratch buffers for inter-stage activations.
    """

    def kernel(*refs):
        x_ref = refs[0]
        w_refs = [refs[1 + 2 * s] for s in range(num_stages)]
        b_refs = [refs[2 + 2 * s] for s in range(num_stages)]
        base = 1 + 2 * num_stages
        o_refs = refs[base:base + num_stages]
        buf_refs = refs[base + num_stages:]

        # Zero the H-padded intermediate buffers once; interior rows are
        # overwritten below, first/last rows stay zero (the spatial padding).
        for buf in buf_refs:
            buf[...] = jnp.zeros(buf.shape, buf.dtype)

        def conv_stage(in_ref, w_ref, b_ref, bn, ho):
            # in_ref[bn]: (2*ho + 2, W_in*C_in)  H zero-padded, (W, C) flattened
            # w_ref     : (3, W_in*C_in, Wo*Cp)  stride-2 W-taps folded in
            # returns     (ho, Wo*Cp) = ReLU(conv + bias), 128 lanes wide
            wn = w_ref.shape[-1]
            acc = jnp.zeros((2 * ho, wn), jnp.float32)
            for ky in range(_KSIZE):
                slab = in_ref[bn, pl.ds(ky, 2 * ho), :]       # contiguous rows
                acc = acc + jnp.dot(slab, w_ref[ky],
                                    preferred_element_type=jnp.float32)
            # Keep only even rows (output H stride 2) via a tiny 0/1 matmul --
            # avoids any strided/gather access inside the kernel.
            r = jax.lax.broadcasted_iota(jnp.int32, (ho, 2 * ho), 0)
            c = jax.lax.broadcasted_iota(jnp.int32, (ho, 2 * ho), 1)
            sel = jnp.where(c == 2 * r, 1.0, 0.0).astype(jnp.float32)
            y = jnp.dot(sel, acc, preferred_element_type=jnp.float32)
            return jnp.maximum(y + b_ref[...], 0.0)

        for bn in range(n_batch):                      # N is tiny: unrolled
            src = x_ref
            for s in range(num_stages):
                y = conv_stage(src, w_refs[s], b_refs[s], bn, stage_hos[s])
                o_refs[s][bn] = y.astype(o_refs[s].dtype)
                if s + 1 < num_stages:
                    # Interior rows of the next stage's H-padded VMEM buffer.
                    buf_refs[s][bn, pl.ds(1, stage_hos[s]), :] = y
                    src = buf_refs[s]

    return kernel


# ----------------------------------------------------------------------------
# Host-side weight restructuring (one-time, constant-folded under jit)
# ----------------------------------------------------------------------------
def _build_structured_weights(weight, bias, w_in, c_store, wo, cp):
    """Fold the stride-2 horizontal taps (and W zero-padding) of a 3x3 conv
    into a dense GEMM weight.

      weight : (Cout, Cin, 3, 3)  torch OIHW layout
      bias   : (Cout,)
      w2     : (3, w_in*c_store, wo*cp)
      b2     : (1, wo*cp)

    w2[ky, w*c_store + ci, v*cp + co] = weight[co, ci, ky, w - 2*v + 1]
    when 0 <= w - 2*v + 1 < 3, else 0.  ci >= Cin and co >= Cout rows/cols
    are zero (channel padding).
    """
    cout, cin, kh, kw = weight.shape
    wt = jnp.transpose(weight, (2, 3, 1, 0)).astype(jnp.float32)  # (ky,kx,ci,co)
    wt = jnp.pad(wt, ((0, 0), (0, 0), (0, c_store - cin), (0, cp - cout)))
    w_idx = jnp.arange(w_in)[:, None, None]
    v_idx = jnp.arange(wo)[None, :, None]
    kx_idx = jnp.arange(kw)[None, None, :]
    sel = (w_idx == _STRIDE * v_idx + kx_idx - _PAD).astype(jnp.float32)
    w2 = jnp.einsum("wvx,yxcd->ywcvd", sel, wt)      # (3, w_in, c_store, wo, cp)
    w2 = w2.reshape(kh, w_in * c_store, wo * cp)
    b2 = jnp.pad(bias.astype(jnp.float32), (0, cp - cout))
    b2 = jnp.tile(b2, (wo,)).reshape(1, wo * cp)
    return w2, b2


# ----------------------------------------------------------------------------
# FPNBackbone.forward equivalent
# ----------------------------------------------------------------------------
def fpn_backbone_forward(x_nchw, layer_params):
    """Mirrors FPNBackbone.forward over a SequentialBackbone of stride-2 3x3
    Conv2d+ReLU stages; returns {'p1': ..., 'p2': ...} in NCHW layout."""
    n, c_in, h, w = x_nchw.shape
    num_stages = len(layer_params)

    # Static per-stage geometry; Cout is lane-padded so every output row is
    # exactly Wo*Cp = 128 lanes (lane-dense stores, dense MXU output width).
    stages = []
    hi, wi, ci_store = h, w, c_in
    for p in layer_params:
        assert p["stride"] == _STRIDE and p["padding"] == _PAD
        assert p["weight"].shape[-2:] == (_KSIZE, _KSIZE)
        assert hi % 2 == 0 and wi % 2 == 0
        cout = p["weight"].shape[0]
        ho, wo = hi // 2, wi // 2
        cp = max(cout, -(-128 // wo))
        stages.append(dict(w_in=wi, c_store=ci_store, ho=ho, wo=wo,
                           cout=cout, cp=cp))
        hi, wi, ci_store = ho, wo, cp

    # Single NCHW->NHWC transpose + H zero-pad at the entry boundary;
    # (W, C) flattened so the kernel only ever reads contiguous row slabs.
    x_nhwc = jnp.transpose(x_nchw, (0, 2, 3, 1)).astype(jnp.float32)
    x_flat = jnp.pad(x_nhwc, ((0, 0), (1, 1), (0, 0), (0, 0))).reshape(
        n, h + 2, w * c_in)

    kernel_args = [x_flat]
    for p, st in zip(layer_params, stages):
        w2, b2 = _build_structured_weights(p["weight"], p["bias"], st["w_in"],
                                           st["c_store"], st["wo"], st["cp"])
        kernel_args += [w2, b2]

    out_shape = tuple(
        jax.ShapeDtypeStruct((n, st["ho"], st["wo"] * st["cp"]), jnp.float32)
        for st in stages)
    # VMEM-resident H-padded activations between stages (never touch HBM).
    scratch_shapes = [
        pltpu.VMEM((n, st["ho"] + 2, st["wo"] * st["cp"]), jnp.float32)
        for st in stages[:-1]]

    kernel = _make_fused_kernel(num_stages, n, tuple(st["ho"] for st in stages))
    vmem_spec = pl.BlockSpec(memory_space=pltpu.MemorySpace.VMEM)

    outs = pl.pallas_call(
        kernel,
        out_shape=out_shape,
        in_specs=[vmem_spec] * len(kernel_args),
        out_specs=tuple(vmem_spec for _ in stages),
        scratch_shapes=scratch_shapes,
    )(*kernel_args)

    # Exit boundary: un-flatten, drop channel padding, back to NCHW (torch).
    features = {}
    for s, st in enumerate(stages):
        y = outs[s].reshape(n, st["ho"], st["wo"], st["cp"])[..., : st["cout"]]
        features[f"p{s + 1}"] = jnp.transpose(y, (0, 3, 1, 2))
    return features


# ----------------------------------------------------------------------------
# Synthetic backbone params + pure-JAX reference + test
# ----------------------------------------------------------------------------
def init_backbone_params(key, channels=(4, 8, 16, 32), k=3):
    """Deterministic synthetic SequentialBackbone params (Conv2d + ReLU)."""
    params = []
    for i in range(len(channels) - 1):
        cin, cout = channels[i], channels[i + 1]
        key, kw_, kb_ = jax.random.split(key, 3)
        fan_in = cin * k * k
        w = jax.random.normal(kw_, (cout, cin, k, k), jnp.float32) / jnp.sqrt(fan_in)
        b = 0.01 * jax.random.normal(kb_, (cout,), jnp.float32)
        params.append({"weight": w, "bias": b, "stride": 2, "padding": 1})
    return params


def _conv_relu_ref(x_nchw, weight, bias, stride, padding):
    y = jax.lax.conv_general_dilated(
        x_nchw, weight, (stride, stride),
        ((padding, padding), (padding, padding)),
        dimension_numbers=("NCHW", "OIHW", "NCHW"))
    return jnp.maximum(y + bias.reshape(1, -1, 1, 1), 0.0)


def _fpn_ref(x_nchw, layer_params):
    features, current = {}, x_nchw
    for i, p in enumerate(layer_params):
        current = _conv_relu_ref(current, p["weight"], p["bias"],
                                 p["stride"], p["padding"])
        features[f"p{i + 1}"] = current
    return features


if __name__ == "__main__":
    key = jax.random.PRNGKey(0)
    key, kx = jax.random.split(key)
    x = jax.random.normal(kx, (2, 4, 16, 16), jnp.float32)  # NCHW, like PyTorch

    params = init_backbone_params(key)

    # jit-ing the wrapper constant-folds the structured-weight build and fuses
    # the boundary layout ops; the backbone itself is one pallas_call.
    fwd = jax.jit(lambda inp: fpn_backbone_forward(inp, params))
    feats = fwd(x)
    feats = jax.tree_util.tree_map(jax.block_until_ready, feats)

    # correctness check vs. pure-JAX reference
    ref = _fpn_ref(x, params)
    assert set(feats.keys()) == {"p1", "p2", "p3"}
    expected_shapes = {"p1": (2, 8, 8, 8), "p2": (2, 16, 4, 4), "p3": (2, 32, 2, 2)}
    for name in ("p1", "p2", "p3"):
        f = feats[name]
        assert f.shape == expected_shapes[name], (name, f.shape)
        assert jnp.allclose(f, ref[name], atol=2e-4, rtol=2e-4), name

    print("KERNEL_OK")
</pallas_src>

<mosaic_0001>
module attributes {stable_mosaic.version = 11 : i64} {
  func.func @kernel(%arg0: memref<2x18x64xf32, #tpu.memory_space<vmem>>, %arg1: memref<3x64x128xf32, #tpu.memory_space<vmem>>, %arg2: memref<1x128xf32, #tpu.memory_space<vmem>>, %arg3: memref<3x128x128xf32, #tpu.memory_space<vmem>>, %arg4: memref<1x128xf32, #tpu.memory_space<vmem>>, %arg5: memref<3x128x128xf32, #tpu.memory_space<vmem>>, %arg6: memref<1x128xf32, #tpu.memory_space<vmem>>, %arg7: memref<2x8x128xf32, #tpu.memory_space<vmem>>, %arg8: memref<2x4x128xf32, #tpu.memory_space<vmem>>, %arg9: memref<2x2x128xf32, #tpu.memory_space<vmem>>, %arg10: memref<2x10x128xf32, #tpu.memory_space<vmem>>, %arg11: memref<2x6x128xf32, #tpu.memory_space<vmem>>) attributes {dimension_semantics = [], scalar_prefetch = 0 : i64, scratch_operands = 2 : i64, tpu.core_type = #tpu.core_type<tc>} {
    %cst = arith.constant 0.000000e+00 : f32
    %0 = vector.broadcast %cst : f32 to vector<2x10x128xf32>
    %c0 = arith.constant 0 : index
    %c0_0 = arith.constant 0 : index
    %c0_1 = arith.constant 0 : index
    %1 = vector.load %arg10[%c0, %c0_0, %c0_1] : memref<2x10x128xf32, #tpu.memory_space<vmem>>, vector<2x10x128xf32>
    tpu.vector_store %arg10[%c0, %c0_0, %c0_1], %0 {strides = array<i32>} : memref<2x10x128xf32, #tpu.memory_space<vmem>>, vector<2x10x128xf32>,
    %cst_2 = arith.constant 0.000000e+00 : f32
    %2 = vector.broadcast %cst_2 : f32 to vector<2x6x128xf32>
    %c0_3 = arith.constant 0 : index
    %c0_4 = arith.constant 0 : index
    %c0_5 = arith.constant 0 : index
    %3 = vector.load %arg11[%c0_3, %c0_4, %c0_5] : memref<2x6x128xf32, #tpu.memory_space<vmem>>, vector<2x6x128xf32>
    tpu.vector_store %arg11[%c0_3, %c0_4, %c0_5], %2 {strides = array<i32>} : memref<2x6x128xf32, #tpu.memory_space<vmem>>, vector<2x6x128xf32>,
    %cst_6 = arith.constant 0.000000e+00 : f32
    %4 = vector.broadcast %cst_6 : f32 to vector<16x128xf32>
    %c0_7 = arith.constant 0 : index
    %c0_8 = arith.constant 0 : index
    %c0_9 = arith.constant 0 : index
    %5 = vector.load %arg0[%c0_7, %c0_8, %c0_9] : memref<2x18x64xf32, #tpu.memory_space<vmem>>, vector<1x16x64xf32>
    %6 = vector.shape_cast %5 : vector<1x16x64xf32> to vector<16x64xf32>
    %c0_10 = arith.constant 0 : index
    %c0_11 = arith.constant 0 : index
    %c0_12 = arith.constant 0 : index
    %7 = vector.load %arg1[%c0_10, %c0_11, %c0_12] : memref<3x64x128xf32, #tpu.memory_space<vmem>>, vector<1x64x128xf32>
    %8 = vector.shape_cast %7 : vector<1x64x128xf32> to vector<64x128xf32>
    %cst_13 = arith.constant dense<0.000000e+00> : vector<16x128xf32>
    %9 = tpu.matmul %6, %8, %cst_13 {dimension_numbers = #tpu.dot_dimension_numbers<[1], [0], [0], [1], [0, 0, 1, 1], [], []>} : vector<16x64xf32>, vector<64x128xf32>, vector<16x128xf32> -> vector<16x128xf32>
    %10 = arith.addf %4, %9 : vector<16x128xf32>
    %c0_14 = arith.constant 0 : index
    %c1 = arith.constant 1 : index
    %c0_15 = arith.constant 0 : index
    %11 = vector.load %arg0[%c0_14, %c1, %c0_15] : memref<2x18x64xf32, #tpu.memory_space<vmem>>, vector<1x16x64xf32>
    %12 = vector.shape_cast %11 : vector<1x16x64xf32> to vector<16x64xf32>
    %c1_16 = arith.constant 1 : index
    %c0_17 = arith.constant 0 : index
    %c0_18 = arith.constant 0 : index
    %13 = vector.load %arg1[%c1_16, %c0_17, %c0_18] : memref<3x64x128xf32, #tpu.memory_space<vmem>>, vector<1x64x128xf32>
    %14 = vector.shape_cast %13 : vector<1x64x128xf32> to vector<64x128xf32>
    %cst_19 = arith.constant dense<0.000000e+00> : vector<16x128xf32>
    %15 = tpu.matmul %12, %14, %cst_19 {dimension_numbers = #tpu.dot_dimension_numbers<[1], [0], [0], [1], [0, 0, 1, 1], [], []>} : vector<16x64xf32>, vector<64x128xf32>, vector<16x128xf32> -> vector<16x128xf32>
    %16 = arith.addf %10, %15 : vector<16x128xf32>
    %c0_20 = arith.constant 0 : index
    %c2 = arith.constant 2 : index
    %c0_21 = arith.constant 0 : index
    %17 = vector.load %arg0[%c0_20, %c2, %c0_21] : memref<2x18x64xf32, #tpu.memory_space<vmem>>, vector<1x16x64xf32>
    %18 = vector.shape_cast %17 : vector<1x16x64xf32> to vector<16x64xf32>
    %c2_22 = arith.constant 2 : index
    %c0_23 = arith.constant 0 : index
    %c0_24 = arith.constant 0 : index
    %19 = vector.load %arg1[%c2_22, %c0_23, %c0_24] : memref<3x64x128xf32, #tpu.memory_space<vmem>>, vector<1x64x128xf32>
    %20 = vector.shape_cast %19 : vector<1x64x128xf32> to vector<64x128xf32>
    %cst_25 = arith.constant dense<0.000000e+00> : vector<16x128xf32>
    %21 = tpu.matmul %18, %20, %cst_25 {dimension_numbers = #tpu.dot_dimension_numbers<[1], [0], [0], [1], [0, 0, 1, 1], [], []>} : vector<16x64xf32>, vector<64x128xf32>, vector<16x128xf32> -> vector<16x128xf32>
    %22 = arith.addf %16, %21 : vector<16x128xf32>
    %23 = tpu.iota {dimensions = array<i32: 0>} : vector<8x16xi32>
    %24 = tpu.iota {dimensions = array<i32: 1>} : vector<8x16xi32>
    %c2_i32 = arith.constant 2 : i32
    %25 = vector.broadcast %c2_i32 : i32 to vector<8x16xi32>
    %26 = arith.muli %25, %23 : vector<8x16xi32>
    %27 = arith.cmpi eq, %24, %26 : vector<8x16xi32>
    %cst_26 = arith.constant 1.000000e+00 : f32
    %cst_27 = arith.constant 0.000000e+00 : f32
    %28 = vector.broadcast %cst_26 : f32 to vector<8x16xf32>
    %29 = vector.broadcast %cst_27 : f32 to vector<8x16xf32>
    %30 = arith.select %27, %28, %29 : vector<8x16xi1>, vector<8x16xf32>
    %cst_28 = arith.constant dense<0.000000e+00> : vector<8x128xf32>
    %31 = tpu.matmul %30, %22, %cst_28 {dimension_numbers = #tpu.dot_dimension_numbers<[1], [0], [0], [1], [0, 0, 1, 1], [], []>} : vector<8x16xf32>, vector<16x128xf32>, vector<8x128xf32> -> vector<8x128xf32>
    %c0_29 = arith.constant 0 : index
    %c0_30 = arith.constant 0 : index
    %32 = vector.load %arg2[%c0_29, %c0_30] : memref<1x128xf32, #tpu.memory_space<vmem>>, vector<1x128xf32>
    %33 = vector.broadcast %32 : vector<1x128xf32> to vector<8x128xf32>
    %34 = arith.addf %31, %33 : vector<8x128xf32>
    %cst_31 = arith.constant 0.000000e+00 : f32
    %35 = vector.broadcast %cst_31 : f32 to vector<8x128xf32>
    %36 = arith.maximumf %34, %35 : vector<8x128xf32>
    %c0_32 = arith.constant 0 : index
    %c0_33 = arith.constant 0 : index
    %c0_34 = arith.constant 0 : index
    %37 = vector.load %arg7[%c0_32, %c0_33, %c0_34] : memref<2x8x128xf32, #tpu.memory_space<vmem>>, vector<1x8x128xf32>
    %38 = vector.shape_cast %37 : vector<1x8x128xf32> to vector<8x128xf32>
    %39 = vector.shape_cast %36 : vector<8x128xf32> to vector<1x8x128xf32>
    tpu.vector_store %arg7[%c0_32, %c0_33, %c0_34], %39 {strides = array<i32>} : memref<2x8x128xf32, #tpu.memory_space<vmem>>, vector<1x8x128xf32>,
    %c0_35 = arith.constant 0 : index
    %c1_36 = arith.constant 1 : index
    %c0_37 = arith.constant 0 : index
    %40 = vector.load %arg10[%c0_35, %c1_36, %c0_37] : memref<2x10x128xf32, #tpu.memory_space<vmem>>, vector<1x8x128xf32>
    %41 = vector.shape_cast %40 : vector<1x8x128xf32> to vector<8x128xf32>
    %42 = vector.shape_cast %36 : vector<8x128xf32> to vector<1x8x128xf32>
    tpu.vector_store %arg10[%c0_35, %c1_36, %c0_37], %42 {strides = array<i32>} : memref<2x10x128xf32, #tpu.memory_space<vmem>>, vector<1x8x128xf32>,
    %cst_38 = arith.constant 0.000000e+00 : f32
    %43 = vector.broadcast %cst_38 : f32 to vector<8x128xf32>
    %c0_39 = arith.constant 0 : index
    %c0_40 = arith.constant 0 : index
    %c0_41 = arith.constant 0 : index
    %44 = vector.load %arg10[%c0_39, %c0_40, %c0_41] : memref<2x10x128xf32, #tpu.memory_space<vmem>>, vector<1x8x128xf32>
    %45 = vector.shape_cast %44 : vector<1x8x128xf32> to vector<8x128xf32>
    %c0_42 = arith.constant 0 : index
    %c0_43 = arith.constant 0 : index
    %c0_44 = arith.constant 0 : index
    %46 = vector.load %arg3[%c0_42, %c0_43, %c0_44] : memref<3x128x128xf32, #tpu.memory_space<vmem>>, vector<1x128x128xf32>
    %47 = vector.shape_cast %46 : vector<1x128x128xf32> to vector<128x128xf32>
    %cst_45 = arith.constant dense<0.000000e+00> : vector<8x128xf32>
    %48 = tpu.matmul %45, %47, %cst_45 {dimension_numbers = #tpu.dot_dimension_numbers<[1], [0], [0], [1], [0, 0, 1, 1], [], []>} : vector<8x128xf32>, vector<128x128xf32>, vector<8x128xf32> -> vector<8x128xf32>
    %49 = arith.addf %43, %48 : vector<8x128xf32>
    %c0_46 = arith.constant 0 : index
    %c1_47 = arith.constant 1 : index
    %c0_48 = arith.constant 0 : index
    %50 = vector.load %arg10[%c0_46, %c1_47, %c0_48] : memref<2x10x128xf32, #tpu.memory_space<vmem>>, vector<1x8x128xf32>
    %51 = vector.shape_cast %50 : vector<1x8x128xf32> to vector<8x128xf32>
    %c1_49 = arith.constant 1 : index
    %c0_50 = arith.constant 0 : index
    %c0_51 = arith.constant 0 : index
    %52 = vector.load %arg3[%c1_49, %c0_50, %c0_51] : memref<3x128x128xf32, #tpu.memory_space<vmem>>, vector<1x128x128xf32>
    %53 = vector.shape_cast %52 : vector<1x128x128xf32> to vector<128x128xf32>
    %cst_52 = arith.constant dense<0.000000e+00> : vector<8x128xf32>
    %54 = tpu.matmul %51, %53, %cst_52 {dimension_numbers = #tpu.dot_dimension_numbers<[1], [0], [0], [1], [0, 0, 1, 1], [], []>} : vector<8x128xf32>, vector<128x128xf32>, vector<8x128xf32> -> vector<8x128xf32>
    %55 = arith.addf %49, %54 : vector<8x128xf32>
    %c0_53 = arith.constant 0 : index
    %c2_54 = arith.constant 2 : index
    %c0_55 = arith.constant 0 : index
    %56 = vector.load %arg10[%c0_53, %c2_54, %c0_55] : memref<2x10x128xf32, #tpu.memory_space<vmem>>, vector<1x8x128xf32>
    %57 = vector.shape_cast %56 : vector<1x8x128xf32> to vector<8x128xf32>
    %c2_56 = arith.constant 2 : index
    %c0_57 = arith.constant 0 : index
    %c0_58 = arith.constant 0 : index
    %58 = vector.load %arg3[%c2_56, %c0_57, %c0_58] : memref<3x128x128xf32, #tpu.memory_space<vmem>>, vector<1x128x128xf32>
    %59 = vector.shape_cast %58 : vector<1x128x128xf32> to vector<128x128xf32>
    %cst_59 = arith.constant dense<0.000000e+00> : vector<8x128xf32>
    %60 = tpu.matmul %57, %59, %cst_59 {dimension_numbers = #tpu.dot_dimension_numbers<[1], [0], [0], [1], [0, 0, 1, 1], [], []>} : vector<8x128xf32>, vector<128x128xf32>, vector<8x128xf32> -> vector<8x128xf32>
    %61 = arith.addf %55, %60 : vector<8x128xf32>
    %62 = tpu.iota {dimensions = array<i32: 0>} : vector<4x8xi32>
    %63 = tpu.iota {dimensions = array<i32: 1>} : vector<4x8xi32>
    %c2_i32_60 = arith.constant 2 : i32
    %64 = vector.broadcast %c2_i32_60 : i32 to vector<4x8xi32>
    %65 = arith.muli %64, %62 : vector<4x8xi32>
    %66 = arith.cmpi eq, %63, %65 : vector<4x8xi32>
    %cst_61 = arith.constant 1.000000e+00 : f32
    %cst_62 = arith.constant 0.000000e+00 : f32
    %67 = vector.broadcast %cst_61 : f32 to vector<4x8xf32>
    %68 = vector.broadcast %cst_62 : f32 to vector<4x8xf32>
    %69 = arith.select %66, %67, %68 : vector<4x8xi1>, vector<4x8xf32>
    %cst_63 = arith.constant dense<0.000000e+00> : vector<4x128xf32>
    %70 = tpu.matmul %69, %61, %cst_63 {dimension_numbers = #tpu.dot_dimension_numbers<[1], [0], [0], [1], [0, 0, 1, 1], [], []>} : vector<4x8xf32>, vector<8x128xf32>, vector<4x128xf32> -> vector<4x128xf32>
    %c0_64 = arith.constant 0 : index
    %c0_65 = arith.constant 0 : index
    %71 = vector.load %arg4[%c0_64, %c0_65] : memref<1x128xf32, #tpu.memory_space<vmem>>, vector<1x128xf32>
    %72 = vector.broadcast %71 : vector<1x128xf32> to vector<4x128xf32>
    %73 = arith.addf %70, %72 : vector<4x128xf32>
    %cst_66 = arith.constant 0.000000e+00 : f32
    %74 = vector.broadcast %cst_66 : f32 to vector<4x128xf32>
    %75 = arith.maximumf %73, %74 : vector<4x128xf32>
    %c0_67 = arith.constant 0 : index
    %c0_68 = arith.constant 0 : index
    %c0_69 = arith.constant 0 : index
    %76 = vector.load %arg8[%c0_67, %c0_68, %c0_69] : memref<2x4x128xf32, #tpu.memory_space<vmem>>, vector<1x4x128xf32>
    %77 = vector.shape_cast %76 : vector<1x4x128xf32> to vector<4x128xf32>
    %78 = vector.shape_cast %75 : vector<4x128xf32> to vector<1x4x128xf32>
    tpu.vector_store %arg8[%c0_67, %c0_68, %c0_69], %78 {strides = array<i32>} : memref<2x4x128xf32, #tpu.memory_space<vmem>>, vector<1x4x128xf32>,
    %c0_70 = arith.constant 0 : index
    %c1_71 = arith.constant 1 : index
    %c0_72 = arith.constant 0 : index
    %79 = vector.load %arg11[%c0_70, %c1_71, %c0_72] : memref<2x6x128xf32, #tpu.memory_space<vmem>>, vector<1x4x128xf32>
    %80 = vector.shape_cast %79 : vector<1x4x128xf32> to vector<4x128xf32>
    %81 = vector.shape_cast %75 : vector<4x128xf32> to vector<1x4x128xf32>
    tpu.vector_store %arg11[%c0_70, %c1_71, %c0_72], %81 {strides = array<i32>} : memref<2x6x128xf32, #tpu.memory_space<vmem>>, vector<1x4x128xf32>,
    %cst_73 = arith.constant 0.000000e+00 : f32
    %82 = vector.broadcast %cst_73 : f32 to vector<4x128xf32>
    %c0_74 = arith.constant 0 : index
    %c0_75 = arith.constant 0 : index
    %c0_76 = arith.constant 0 : index
    %83 = vector.load %arg11[%c0_74, %c0_75, %c0_76] : memref<2x6x128xf32, #tpu.memory_space<vmem>>, vector<1x4x128xf32>
    %84 = vector.shape_cast %83 : vector<1x4x128xf32> to vector<4x128xf32>
    %c0_77 = arith.constant 0 : index
    %c0_78 = arith.constant 0 : index
    %c0_79 = arith.constant 0 : index
    %85 = vector.load %arg5[%c0_77, %c0_78, %c0_79] : memref<3x128x128xf32, #tpu.memory_space<vmem>>, vector<1x128x128xf32>
    %86 = vector.shape_cast %85 : vector<1x128x128xf32> to vector<128x128xf32>
    %cst_80 = arith.constant dense<0.000000e+00> : vector<4x128xf32>
    %87 = tpu.matmul %84, %86, %cst_80 {dimension_numbers = #tpu.dot_dimension_numbers<[1], [0], [0], [1], [0, 0, 1, 1], [], []>} : vector<4x128xf32>, vector<128x128xf32>, vector<4x128xf32> -> vector<4x128xf32>
    %88 = arith.addf %82, %87 : vector<4x128xf32>
    %c0_81 = arith.constant 0 : index
    %c1_82 = arith.constant 1 : index
    %c0_83 = arith.constant 0 : index
    %89 = vector.load %arg11[%c0_81, %c1_82, %c0_83] : memref<2x6x128xf32, #tpu.memory_space<vmem>>, vector<1x4x128xf32>
    %90 = vector.shape_cast %89 : vector<1x4x128xf32> to vector<4x128xf32>
    %c1_84 = arith.constant 1 : index
    %c0_85 = arith.constant 0 : index
    %c0_86 = arith.constant 0 : index
    %91 = vector.load %arg5[%c1_84, %c0_85, %c0_86] : memref<3x128x128xf32, #tpu.memory_space<vmem>>, vector<1x128x128xf32>
    %92 = vector.shape_cast %91 : vector<1x128x128xf32> to vector<128x128xf32>
    %cst_87 = arith.constant dense<0.000000e+00> : vector<4x128xf32>
    %93 = tpu.matmul %90, %92, %cst_87 {dimension_numbers = #tpu.dot_dimension_numbers<[1], [0], [0], [1], [0, 0, 1, 1], [], []>} : vector<4x128xf32>, vector<128x128xf32>, vector<4x128xf32> -> vector<4x128xf32>
    %94 = arith.addf %88, %93 : vector<4x128xf32>
    %c0_88 = arith.constant 0 : index
    %c2_89 = arith.constant 2 : index
    %c0_90 = arith.constant 0 : index
    %95 = vector.load %arg11[%c0_88, %c2_89, %c0_90] : memref<2x6x128xf32, #tpu.memory_space<vmem>>, vector<1x4x128xf32>
    %96 = vector.shape_cast %95 : vector<1x4x128xf32> to vector<4x128xf32>
    %c2_91 = arith.constant 2 : index
    %c0_92 = arith.constant 0 : index
    %c0_93 = arith.constant 0 : index
    %97 = vector.load %arg5[%c2_91, %c0_92, %c0_93] : memref<3x128x128xf32, #tpu.memory_space<vmem>>, vector<1x128x128xf32>
    %98 = vector.shape_cast %97 : vector<1x128x128xf32> to vector<128x128xf32>
    %cst_94 = arith.constant dense<0.000000e+00> : vector<4x128xf32>
    %99 = tpu.matmul %96, %98, %cst_94 {dimension_numbers = #tpu.dot_dimension_numbers<[1], [0], [0], [1], [0, 0, 1, 1], [], []>} : vector<4x128xf32>, vector<128x128xf32>, vector<4x128xf32> -> vector<4x128xf32>
    %100 = arith.addf %94, %99 : vector<4x128xf32>
    %101 = tpu.iota {dimensions = array<i32: 0>} : vector<2x4xi32>
    %102 = tpu.iota {dimensions = array<i32: 1>} : vector<2x4xi32>
    %c2_i32_95 = arith.constant 2 : i32
    %103 = vector.broadcast %c2_i32_95 : i32 to vector<2x4xi32>
    %104 = arith.muli %103, %101 : vector<2x4xi32>
    %105 = arith.cmpi eq, %102, %104 : vector<2x4xi32>
    %cst_96 = arith.constant 1.000000e+00 : f32
    %cst_97 = arith.constant 0.000000e+00 : f32
    %106 = vector.broadcast %cst_96 : f32 to vector<2x4xf32>
    %107 = vector.broadcast %cst_97 : f32 to vector<2x4xf32>
    %108 = arith.select %105, %106, %107 : vector<2x4xi1>, vector<2x4xf32>
    %cst_98 = arith.constant dense<0.000000e+00> : vector<2x128xf32>
    %109 = tpu.matmul %108, %100, %cst_98 {dimension_numbers = #tpu.dot_dimension_numbers<[1], [0], [0], [1], [0, 0, 1, 1], [], []>} : vector<2x4xf32>, vector<4x128xf32>, vector<2x128xf32> -> vector<2x128xf32>
    %c0_99 = arith.constant 0 : index
    %c0_100 = arith.constant 0 : index
    %110 = vector.load %arg6[%c0_99, %c0_100] : memref<1x128xf32, #tpu.memory_space<vmem>>, vector<1x128xf32>
    %111 = vector.broadcast %110 : vector<1x128xf32> to vector<2x128xf32>
    %112 = arith.addf %109, %111 : vector<2x128xf32>
    %cst_101 = arith.constant 0.000000e+00 : f32
    %113 = vector.broadcast %cst_101 : f32 to vector<2x128xf32>
    %114 = arith.maximumf %112, %113 : vector<2x128xf32>
    %c0_102 = arith.constant 0 : index
    %c0_103 = arith.constant 0 : index
    %c0_104 = arith.constant 0 : index
    %115 = vector.load %arg9[%c0_102, %c0_103, %c0_104] : memref<2x2x128xf32, #tpu.memory_space<vmem>>, vector<1x2x128xf32>
    %116 = vector.shape_cast %115 : vector<1x2x128xf32> to vector<2x128xf32>
    %117 = vector.shape_cast %114 : vector<2x128xf32> to vector<1x2x128xf32>
    tpu.vector_store %arg9[%c0_102, %c0_103, %c0_104], %117 {strides = array<i32>} : memref<2x2x128xf32, #tpu.memory_space<vmem>>, vector<1x2x128xf32>,
    %cst_105 = arith.constant 0.000000e+00 : f32
    %118 = vector.broadcast %cst_105 : f32 to vector<16x128xf32>
    %c1_106 = arith.constant 1 : index
    %c0_107 = arith.constant 0 : index
    %c0_108 = arith.constant 0 : index
    %119 = vector.load %arg0[%c1_106, %c0_107, %c0_108] : memref<2x18x64xf32, #tpu.memory_space<vmem>>, vector<1x16x64xf32>
    %120 = vector.shape_cast %119 : vector<1x16x64xf32> to vector<16x64xf32>
    %c0_109 = arith.constant 0 : index
    %c0_110 = arith.constant 0 : index
    %c0_111 = arith.constant 0 : index
    %121 = vector.load %arg1[%c0_109, %c0_110, %c0_111] : memref<3x64x128xf32, #tpu.memory_space<vmem>>, vector<1x64x128xf32>
    %122 = vector.shape_cast %121 : vector<1x64x128xf32> to vector<64x128xf32>
    %cst_112 = arith.constant dense<0.000000e+00> : vector<16x128xf32>
    %123 = tpu.matmul %120, %122, %cst_112 {dimension_numbers = #tpu.dot_dimension_numbers<[1], [0], [0], [1], [0, 0, 1, 1], [], []>} : vector<16x64xf32>, vector<64x128xf32>, vector<16x128xf32> -> vector<16x128xf32>
    %124 = arith.addf %118, %123 : vector<16x128xf32>
    %c1_113 = arith.constant 1 : index
    %c1_114 = arith.constant 1 : index
    %c0_115 = arith.constant 0 : index
    %125 = vector.load %arg0[%c1_113, %c1_114, %c0_115] : memref<2x18x64xf32, #tpu.memory_space<vmem>>, vector<1x16x64xf32>
    %126 = vector.shape_cast %125 : vector<1x16x64xf32> to vector<16x64xf32>
    %c1_116 = arith.constant 1 : index
    %c0_117 = arith.constant 0 : index
    %c0_118 = arith.constant 0 : index
    %127 = vector.load %arg1[%c1_116, %c0_117, %c0_118] : memref<3x64x128xf32, #tpu.memory_space<vmem>>, vector<1x64x128xf32>
    %128 = vector.shape_cast %127 : vector<1x64x128xf32> to vector<64x128xf32>
    %cst_119 = arith.constant dense<0.000000e+00> : vector<16x128xf32>
    %129 = tpu.matmul %126, %128, %cst_119 {dimension_numbers = #tpu.dot_dimension_numbers<[1], [0], [0], [1], [0, 0, 1, 1], [], []>} : vector<16x64xf32>, vector<64x128xf32>, vector<16x128xf32> -> vector<16x128xf32>
    %130 = arith.addf %124, %129 : vector<16x128xf32>
    %c1_120 = arith.constant 1 : index
    %c2_121 = arith.constant 2 : index
    %c0_122 = arith.constant 0 : index
    %131 = vector.load %arg0[%c1_120, %c2_121, %c0_122] : memref<2x18x64xf32, #tpu.memory_space<vmem>>, vector<1x16x64xf32>
    %132 = vector.shape_cast %131 : vector<1x16x64xf32> to vector<16x64xf32>
    %c2_123 = arith.constant 2 : index
    %c0_124 = arith.constant 0 : index
    %c0_125 = arith.constant 0 : index
    %133 = vector.load %arg1[%c2_123, %c0_124, %c0_125] : memref<3x64x128xf32, #tpu.memory_space<vmem>>, vector<1x64x128xf32>
    %134 = vector.shape_cast %133 : vector<1x64x128xf32> to vector<64x128xf32>
    %cst_126 = arith.constant dense<0.000000e+00> : vector<16x128xf32>
    %135 = tpu.matmul %132, %134, %cst_126 {dimension_numbers = #tpu.dot_dimension_numbers<[1], [0], [0], [1], [0, 0, 1, 1], [], []>} : vector<16x64xf32>, vector<64x128xf32>, vector<16x128xf32> -> vector<16x128xf32>
    %136 = arith.addf %130, %135 : vector<16x128xf32>
    %137 = tpu.iota {dimensions = array<i32: 0>} : vector<8x16xi32>
    %138 = tpu.iota {dimensions = array<i32: 1>} : vector<8x16xi32>
    %c2_i32_127 = arith.constant 2 : i32
    %139 = vector.broadcast %c2_i32_127 : i32 to vector<8x16xi32>
    %140 = arith.muli %139, %137 : vector<8x16xi32>
    %141 = arith.cmpi eq, %138, %140 : vector<8x16xi32>
    %cst_128 = arith.constant 1.000000e+00 : f32
    %cst_129 = arith.constant 0.000000e+00 : f32
    %142 = vector.broadcast %cst_128 : f32 to vector<8x16xf32>
    %143 = vector.broadcast %cst_129 : f32 to vector<8x16xf32>
    %144 = arith.select %141, %142, %143 : vector<8x16xi1>, vector<8x16xf32>
    %cst_130 = arith.constant dense<0.000000e+00> : vector<8x128xf32>
    %145 = tpu.matmul %144, %136, %cst_130 {dimension_numbers = #tpu.dot_dimension_numbers<[1], [0], [0], [1], [0, 0, 1, 1], [], []>} : vector<8x16xf32>, vector<16x128xf32>, vector<8x128xf32> -> vector<8x128xf32>
    %c0_131 = arith.constant 0 : index
    %c0_132 = arith.constant 0 : index
    %146 = vector.load %arg2[%c0_131, %c0_132] : memref<1x128xf32, #tpu.memory_space<vmem>>, vector<1x128xf32>
    %147 = vector.broadcast %146 : vector<1x128xf32> to vector<8x128xf32>
    %148 = arith.addf %145, %147 : vector<8x128xf32>
    %cst_133 = arith.constant 0.000000e+00 : f32
    %149 = vector.broadcast %cst_133 : f32 to vector<8x128xf32>
    %150 = arith.maximumf %148, %149 : vector<8x128xf32>
    %c1_134 = arith.constant 1 : index
    %c0_135 = arith.constant 0 : index
    %c0_136 = arith.constant 0 : index
    %151 = vector.load %arg7[%c1_134, %c0_135, %c0_136] : memref<2x8x128xf32, #tpu.memory_space<vmem>>, vector<1x8x128xf32>
    %152 = vector.shape_cast %151 : vector<1x8x128xf32> to vector<8x128xf32>
    %153 = vector.shape_cast %150 : vector<8x128xf32> to vector<1x8x128xf32>
    tpu.vector_store %arg7[%c1_134, %c0_135, %c0_136], %153 {strides = array<i32>} : memref<2x8x128xf32, #tpu.memory_space<vmem>>, vector<1x8x128xf32>,
    %c1_137 = arith.constant 1 : index
    %c1_138 = arith.constant 1 : index
    %c0_139 = arith.constant 0 : index
    %154 = vector.load %arg10[%c1_137, %c1_138, %c0_139] : memref<2x10x128xf32, #tpu.memory_space<vmem>>, vector<1x8x128xf32>
    %155 = vector.shape_cast %154 : vector<1x8x128xf32> to vector<8x128xf32>
    %156 = vector.shape_cast %150 : vector<8x128xf32> to vector<1x8x128xf32>
    tpu.vector_store %arg10[%c1_137, %c1_138, %c0_139], %156 {strides = array<i32>} : memref<2x10x128xf32, #tpu.memory_space<vmem>>, vector<1x8x128xf32>,
    %cst_140 = arith.constant 0.000000e+00 : f32
    %157 = vector.broadcast %cst_140 : f32 to vector<8x128xf32>
    %c1_141 = arith.constant 1 : index
    %c0_142 = arith.constant 0 : index
    %c0_143 = arith.constant 0 : index
    %158 = vector.load %arg10[%c1_141, %c0_142, %c0_143] : memref<2x10x128xf32, #tpu.memory_space<vmem>>, vector<1x8x128xf32>
    %159 = vector.shape_cast %158 : vector<1x8x128xf32> to vector<8x128xf32>
    %c0_144 = arith.constant 0 : index
    %c0_145 = arith.constant 0 : index
    %c0_146 = arith.constant 0 : index
    %160 = vector.load %arg3[%c0_144, %c0_145, %c0_146] : memref<3x128x128xf32, #tpu.memory_space<vmem>>, vector<1x128x128xf32>
    %161 = vector.shape_cast %160 : vector<1x128x128xf32> to vector<128x128xf32>
    %cst_147 = arith.constant dense<0.000000e+00> : vector<8x128xf32>
    %162 = tpu.matmul %159, %161, %cst_147 {dimension_numbers = #tpu.dot_dimension_numbers<[1], [0], [0], [1], [0, 0, 1, 1], [], []>} : vector<8x128xf32>, vector<128x128xf32>, vector<8x128xf32> -> vector<8x128xf32>
    %163 = arith.addf %157, %162 : vector<8x128xf32>
    %c1_148 = arith.constant 1 : index
    %c1_149 = arith.constant 1 : index
    %c0_150 = arith.constant 0 : index
    %164 = vector.load %arg10[%c1_148, %c1_149, %c0_150] : memref<2x10x128xf32, #tpu.memory_space<vmem>>, vector<1x8x128xf32>
    %165 = vector.shape_cast %164 : vector<1x8x128xf32> to vector<8x128xf32>
    %c1_151 = arith.constant 1 : index
    %c0_152 = arith.constant 0 : index
    %c0_153 = arith.constant 0 : index
    %166 = vector.load %arg3[%c1_151, %c0_152, %c0_153] : memref<3x128x128xf32, #tpu.memory_space<vmem>>, vector<1x128x128xf32>
    %167 = vector.shape_cast %166 : vector<1x128x128xf32> to vector<128x128xf32>
    %cst_154 = arith.constant dense<0.000000e+00> : vector<8x128xf32>
    %168 = tpu.matmul %165, %167, %cst_154 {dimension_numbers = #tpu.dot_dimension_numbers<[1], [0], [0], [1], [0, 0, 1, 1], [], []>} : vector<8x128xf32>, vector<128x128xf32>, vector<8x128xf32> -> vector<8x128xf32>
    %169 = arith.addf %163, %168 : vector<8x128xf32>
    %c1_155 = arith.constant 1 : index
    %c2_156 = arith.constant 2 : index
    %c0_157 = arith.constant 0 : index
    %170 = vector.load %arg10[%c1_155, %c2_156, %c0_157] : memref<2x10x128xf32, #tpu.memory_space<vmem>>, vector<1x8x128xf32>
    %171 = vector.shape_cast %170 : vector<1x8x128xf32> to vector<8x128xf32>
    %c2_158 = arith.constant 2 : index
    %c0_159 = arith.constant 0 : index
    %c0_160 = arith.constant 0 : index
    %172 = vector.load %arg3[%c2_158, %c0_159, %c0_160] : memref<3x128x128xf32, #tpu.memory_space<vmem>>, vector<1x128x128xf32>
    %173 = vector.shape_cast %172 : vector<1x128x128xf32> to vector<128x128xf32>
    %cst_161 = arith.constant dense<0.000000e+00> : vector<8x128xf32>
    %174 = tpu.matmul %171, %173, %cst_161 {dimension_numbers = #tpu.dot_dimension_numbers<[1], [0], [0], [1], [0, 0, 1, 1], [], []>} : vector<8x128xf32>, vector<128x128xf32>, vector<8x128xf32> -> vector<8x128xf32>
    %175 = arith.addf %169, %174 : vector<8x128xf32>
    %176 = tpu.iota {dimensions = array<i32: 0>} : vector<4x8xi32>
    %177 = tpu.iota {dimensions = array<i32: 1>} : vector<4x8xi32>
    %c2_i32_162 = arith.constant 2 : i32
    %178 = vector.broadcast %c2_i32_162 : i32 to vector<4x8xi32>
    %179 = arith.muli %178, %176 : vector<4x8xi32>
    %180 = arith.cmpi eq, %177, %179 : vector<4x8xi32>
    %cst_163 = arith.constant 1.000000e+00 : f32
    %cst_164 = arith.constant 0.000000e+00 : f32
    %181 = vector.broadcast %cst_163 : f32 to vector<4x8xf32>
    %182 = vector.broadcast %cst_164 : f32 to vector<4x8xf32>
    %183 = arith.select %180, %181, %182 : vector<4x8xi1>, vector<4x8xf32>
    %cst_165 = arith.constant dense<0.000000e+00> : vector<4x128xf32>
    %184 = tpu.matmul %183, %175, %cst_165 {dimension_numbers = #tpu.dot_dimension_numbers<[1], [0], [0], [1], [0, 0, 1, 1], [], []>} : vector<4x8xf32>, vector<8x128xf32>, vector<4x128xf32> -> vector<4x128xf32>
    %c0_166 = arith.constant 0 : index
    %c0_167 = arith.constant 0 : index
    %185 = vector.load %arg4[%c0_166, %c0_167] : memref<1x128xf32, #tpu.memory_space<vmem>>, vector<1x128xf32>
    %186 = vector.broadcast %185 : vector<1x128xf32> to vector<4x128xf32>
    %187 = arith.addf %184, %186 : vector<4x128xf32>
    %cst_168 = arith.constant 0.000000e+00 : f32
    %188 = vector.broadcast %cst_168 : f32 to vector<4x128xf32>
    %189 = arith.maximumf %187, %188 : vector<4x128xf32>
    %c1_169 = arith.constant 1 : index
    %c0_170 = arith.constant 0 : index
    %c0_171 = arith.constant 0 : index
    %190 = vector.load %arg8[%c1_169, %c0_170, %c0_171] : memref<2x4x128xf32, #tpu.memory_space<vmem>>, vector<1x4x128xf32>
    %191 = vector.shape_cast %190 : vector<1x4x128xf32> to vector<4x128xf32>
    %192 = vector.shape_cast %189 : vector<4x128xf32> to vector<1x4x128xf32>
    tpu.vector_store %arg8[%c1_169, %c0_170, %c0_171], %192 {strides = array<i32>} : memref<2x4x128xf32, #tpu.memory_space<vmem>>, vector<1x4x128xf32>,
    %c1_172 = arith.constant 1 : index
    %c1_173 = arith.constant 1 : index
    %c0_174 = arith.constant 0 : index
    %193 = vector.load %arg11[%c1_172, %c1_173, %c0_174] : memref<2x6x128xf32, #tpu.memory_space<vmem>>, vector<1x4x128xf32>
    %194 = vector.shape_cast %193 : vector<1x4x128xf32> to vector<4x128xf32>
    %195 = vector.shape_cast %189 : vector<4x128xf32> to vector<1x4x128xf32>
    tpu.vector_store %arg11[%c1_172, %c1_173, %c0_174], %195 {strides = array<i32>} : memref<2x6x128xf32, #tpu.memory_space<vmem>>, vector<1x4x128xf32>,
    %cst_175 = arith.constant 0.000000e+00 : f32
    %196 = vector.broadcast %cst_175 : f32 to vector<4x128xf32>
    %c1_176 = arith.constant 1 : index
    %c0_177 = arith.constant 0 : index
    %c0_178 = arith.constant 0 : index
    %197 = vector.load %arg11[%c1_176, %c0_177, %c0_178] : memref<2x6x128xf32, #tpu.memory_space<vmem>>, vector<1x4x128xf32>
    %198 = vector.shape_cast %197 : vector<1x4x128xf32> to vector<4x128xf32>
    %c0_179 = arith.constant 0 : index
    %c0_180 = arith.constant 0 : index
    %c0_181 = arith.constant 0 : index
    %199 = vector.load %arg5[%c0_179, %c0_180, %c0_181] : memref<3x128x128xf32, #tpu.memory_space<vmem>>, vector<1x128x128xf32>
    %200 = vector.shape_cast %199 : vector<1x128x128xf32> to vector<128x128xf32>
    %cst_182 = arith.constant dense<0.000000e+00> : vector<4x128xf32>
    %201 = tpu.matmul %198, %200, %cst_182 {dimension_numbers = #tpu.dot_dimension_numbers<[1], [0], [0], [1], [0, 0, 1, 1], [], []>} : vector<4x128xf32>, vector<128x128xf32>, vector<4x128xf32> -> vector<4x128xf32>
    %202 = arith.addf %196, %201 : vector<4x128xf32>
    %c1_183 = arith.constant 1 : index
    %c1_184 = arith.constant 1 : index
    %c0_185 = arith.constant 0 : index
    %203 = vector.load %arg11[%c1_183, %c1_184, %c0_185] : memref<2x6x128xf32, #tpu.memory_space<vmem>>, vector<1x4x128xf32>
    %204 = vector.shape_cast %203 : vector<1x4x128xf32> to vector<4x128xf32>
    %c1_186 = arith.constant 1 : index
    %c0_187 = arith.constant 0 : index
    %c0_188 = arith.constant 0 : index
    %205 = vector.load %arg5[%c1_186, %c0_187, %c0_188] : memref<3x128x128xf32, #tpu.memory_space<vmem>>, vector<1x128x128xf32>
    %206 = vector.shape_cast %205 : vector<1x128x128xf32> to vector<128x128xf32>
    %cst_189 = arith.constant dense<0.000000e+00> : vector<4x128xf32>
    %207 = tpu.matmul %204, %206, %cst_189 {dimension_numbers = #tpu.dot_dimension_numbers<[1], [0], [0], [1], [0, 0, 1, 1], [], []>} : vector<4x128xf32>, vector<128x128xf32>, vector<4x128xf32> -> vector<4x128xf32>
    %208 = arith.addf %202, %207 : vector<4x128xf32>
    %c1_190 = arith.constant 1 : index
    %c2_191 = arith.constant 2 : index
    %c0_192 = arith.constant 0 : index
    %209 = vector.load %arg11[%c1_190, %c2_191, %c0_192] : memref<2x6x128xf32, #tpu.memory_space<vmem>>, vector<1x4x128xf32>
    %210 = vector.shape_cast %209 : vector<1x4x128xf32> to vector<4x128xf32>
    %c2_193 = arith.constant 2 : index
    %c0_194 = arith.constant 0 : index
    %c0_195 = arith.constant 0 : index
    %211 = vector.load %arg5[%c2_193, %c0_194, %c0_195] : memref<3x128x128xf32, #tpu.memory_space<vmem>>, vector<1x128x128xf32>
    %212 = vector.shape_cast %211 : vector<1x128x128xf32> to vector<128x128xf32>
    %cst_196 = arith.constant dense<0.000000e+00> : vector<4x128xf32>
    %213 = tpu.matmul %210, %212, %cst_196 {dimension_numbers = #tpu.dot_dimension_numbers<[1], [0], [0], [1], [0, 0, 1, 1], [], []>} : vector<4x128xf32>, vector<128x128xf32>, vector<4x128xf32> -> vector<4x128xf32>
    %214 = arith.addf %208, %213 : vector<4x128xf32>
    %215 = tpu.iota {dimensions = array<i32: 0>} : vector<2x4xi32>
    %216 = tpu.iota {dimensions = array<i32: 1>} : vector<2x4xi32>
    %c2_i32_197 = arith.constant 2 : i32
    %217 = vector.broadcast %c2_i32_197 : i32 to vector<2x4xi32>
    %218 = arith.muli %217, %215 : vector<2x4xi32>
    %219 = arith.cmpi eq, %216, %218 : vector<2x4xi32>
    %cst_198 = arith.constant 1.000000e+00 : f32
    %cst_199 = arith.constant 0.000000e+00 : f32
    %220 = vector.broadcast %cst_198 : f32 to vector<2x4xf32>
    %221 = vector.broadcast %cst_199 : f32 to vector<2x4xf32>
    %222 = arith.select %219, %220, %221 : vector<2x4xi1>, vector<2x4xf32>
    %cst_200 = arith.constant dense<0.000000e+00> : vector<2x128xf32>
    %223 = tpu.matmul %222, %214, %cst_200 {dimension_numbers = #tpu.dot_dimension_numbers<[1], [0], [0], [1], [0, 0, 1, 1], [], []>} : vector<2x4xf32>, vector<4x128xf32>, vector<2x128xf32> -> vector<2x128xf32>
    %c0_201 = arith.constant 0 : index
    %c0_202 = arith.constant 0 : index
    %224 = vector.load %arg6[%c0_201, %c0_202] : memref<1x128xf32, #tpu.memory_space<vmem>>, vector<1x128xf32>
    %225 = vector.broadcast %224 : vector<1x128xf32> to vector<2x128xf32>
    %226 = arith.addf %223, %225 : vector<2x128xf32>
    %cst_203 = arith.constant 0.000000e+00 : f32
    %227 = vector.broadcast %cst_203 : f32 to vector<2x128xf32>
    %228 = arith.maximumf %226, %227 : vector<2x128xf32>
    %c1_204 = arith.constant 1 : index
    %c0_205 = arith.constant 0 : index
    %c0_206 = arith.constant 0 : index
    %229 = vector.load %arg9[%c1_204, %c0_205, %c0_206] : memref<2x2x128xf32, #tpu.memory_space<vmem>>, vector<1x2x128xf32>
    %230 = vector.shape_cast %229 : vector<1x2x128xf32> to vector<2x128xf32>
    %231 = vector.shape_cast %228 : vector<2x128xf32> to vector<1x2x128xf32>
    tpu.vector_store %arg9[%c1_204, %c0_205, %c0_206], %231 {strides = array<i32>} : memref<2x2x128xf32, #tpu.memory_space<vmem>>, vector<1x2x128xf32>,
    return
  }
}

</mosaic_0001>

<llo_original>
// kernel: tile.18
$region0: #{tile.18}
  #allocation0 [shape = 's32[1]{0}', space=sflag, size = 0x4, scoped, tag = 'scoped memory for tile.18']
  %s0 = inlined_call_operand.vmem [shape: f32[16], index: 0, kind: input, shape index: {}]
  %s1 = inlined_call_operand.vmem [shape: f32[8,16], index: 1, kind: output, shape index: {}]
  // Predicated region
  $region2: #{tile.18} parent=0 // pred_check
    _
  $region3: #{tile.18} parent=0 // pred_check_branch
    %3 = sbr.rel (0) target = $region5
  $region4: #{tile.18} parent=0 // pred_region
    _
  $region5: #{tile.18} parent=0 // pred_fallthru
    _
  %v4 = vld [vmem:[%s0] ss:$0 sm:$0xff]
  %5 = vst [vmem:[%s1] sm:$0xff] %v4

// kernel: tile.19
$region0: #{tile.19}
  %s0 = inlined_call_operand.vmem [shape: f32[8,16], index: 0, kind: input, shape index: {}]
  %s1 = inlined_call_operand.vmem [shape: f32[1,128], index: 1, kind: output, shape index: {}]
  $region1: #{tile.19} parent=0
    #allocation0 [shape = 'u8[4096]{0}', space=vmem, size = 0x1000, scoped, tag = 'scoped mem for output reshape']
    %v2 = vld [vmem:[%s0] sm:$0x1]
    %vm3 = vcmask 130048
    %4 = vst.msk [vmem:[#allocation0] sm:$0x1] %vm3, %v2
    %s5 = scalar_lea.vmem %s0, 7
    %v6 = vld [vmem:[%s5] sm:$0x1]
    %7 = vrot.lane.b32.xlu0 %v6, 112
    %v8 = vpop.permute.xlu0 %7
    %vm9 = vcmask 1048448
    %10 = vst.msk [vmem:[#allocation0] sm:$0x1] %vm9, %v8
    %s11 = scalar_lea.vmem %s0, 6
    %v12 = vld [vmem:[%s11] sm:$0x1]
    %13 = vrot.lane.b32.xlu0 %v12, 96
    %v14 = vpop.permute.xlu0 %13
    %vm15 = vcmask 917248
    %16 = vst.msk [vmem:[#allocation0] sm:$0x1] %vm15, %v14
    %s17 = scalar_lea.vmem %s0, 5
    %v18 = vld [vmem:[%s17] sm:$0x1]
    %19 = vrot.lane.b32.xlu0 %v18, 80
    %v20 = vpop.permute.xlu0 %19
    %vm21 = vcmask 786048
    %22 = vst.msk [vmem:[#allocation0] sm:$0x1] %vm21, %v20
    %s23 = scalar_lea.vmem %s0, 4
    %v24 = vld [vmem:[%s23] sm:$0x1]
    %25 = vrot.lane.b32.xlu0 %v24, 64
    %v26 = vpop.permute.xlu0 %25
    %vm27 = vcmask 654848
    %28 = vst.msk [vmem:[#allocation0] sm:$0x1] %vm27, %v26
    %s29 = scalar_lea.vmem %s0, 3
    %v30 = vld [vmem:[%s29] sm:$0x1]
    %31 = vrot.lane.b32.xlu0 %v30, 48
    %v32 = vpop.permute.xlu0 %31
    %vm33 = vcmask 523648
    %34 = vst.msk [vmem:[#allocation0] sm:$0x1] %vm33, %v32
    %s35 = scalar_lea.vmem %s0, 2
    %v36 = vld [vmem:[%s35] sm:$0x1]
    %37 = vrot.lane.b32.xlu0 %v36, 32
    %v38 = vpop.permute.xlu0 %37
    %vm39 = vcmask 392448
    %40 = vst.msk [vmem:[#allocation0] sm:$0x1] %vm39, %v38
    %s41 = scalar_lea.vmem %s0, 1
    %v42 = vld [vmem:[%s41] sm:$0x1]
    %43 = vrot.lane.b32.xlu0 %v42, 16
    %v44 = vpop.permute.xlu0 %43
    %vm45 = vcmask 261248
    %46 = vst.msk [vmem:[#allocation0] sm:$0x1] %vm45, %v44
    %s48 = ssub.s32 2, 1
    %v49 = vld [vmem:[#allocation0] sm:%s48]
    %s51 = ssub.s32 2, 1
    %52 = vst [vmem:[%s1] sm:%s51] %v49

// kernel: tile.23
$region0: #{tile.23}
  #allocation0 [shape = 's32[1]{0}', space=sflag, size = 0x4, scoped, tag = 'scoped memory for tile.23']
  %s0 = inlined_call_operand.vmem [shape: f32[32], index: 0, kind: input, shape index: {}]
  %s1 = inlined_call_operand.vmem [shape: f32[4,32], index: 1, kind: output, shape index: {}]
  // Predicated region
  $region2: #{tile.23} parent=0 // pred_check
    _
  $region3: #{tile.23} parent=0 // pred_check_branch
    %3 = sbr.rel (0) target = $region5
  $region4: #{tile.23} parent=0 // pred_region
    _
  $region5: #{tile.23} parent=0 // pred_fallthru
    _
  %v4 = vld [vmem:[%s0] ss:$0 sm:$0xff]
  %5 = vst [vmem:[%s1] sm:$0xf] %v4

// kernel: tile.24
$region0: #{tile.24}
  %s0 = inlined_call_operand.vmem [shape: f32[4,32], index: 0, kind: input, shape index: {}]
  %s1 = inlined_call_operand.vmem [shape: f32[1,128], index: 1, kind: output, shape index: {}]
  $region1: #{tile.24} parent=0
    #allocation0 [shape = 'u8[4096]{0}', space=vmem, size = 0x1000, scoped, tag = 'scoped mem for output reshape']
    #allocation1 [shape = 'u8[4096]{0}', space=vmem, size = 0x1000, scoped, tag = 'scoped mem for input reshape']
    %s3 = ssub.s32 16, 1
    %v4 = vld [vmem:[%s0] sm:%s3]
    %5 = vst [vmem:[#allocation1] sm:%s3] %v4
    %v6 = vld [vmem:[#allocation1] sm:$0x1]
    %vm7 = vcmask 261120
    %8 = vst.msk [vmem:[#allocation0] sm:$0x1] %vm7, %v6
    %s9 = scalar_lea.vmem [#allocation1], 3
    %v10 = vld [vmem:[%s9] sm:$0x1]
    %11 = vrot.lane.b32.xlu0 %v10, 96
    %v12 = vpop.permute.xlu0 %11
    %vm13 = vcmask 1048320
    %14 = vst.msk [vmem:[#allocation0] sm:$0x1] %vm13, %v12
    %s15 = scalar_lea.vmem [#allocation1], 2
    %v16 = vld [vmem:[%s15] sm:$0x1]
    %17 = vrot.lane.b32.xlu0 %v16, 64
    %v18 = vpop.permute.xlu0 %17
    %vm19 = vcmask 785920
    %20 = vst.msk [vmem:[#allocation0] sm:$0x1] %vm19, %v18
    %s21 = scalar_lea.vmem [#allocation1], 1
    %v22 = vld [vmem:[%s21] sm:$0x1]
    %23 = vrot.lane.b32.xlu0 %v22, 32
    %v24 = vpop.permute.xlu0 %23
    %vm25 = vcmask 523520
    %26 = vst.msk [vmem:[#allocation0] sm:$0x1] %vm25, %v24
    %s28 = ssub.s32 2, 1
    %v29 = vld [vmem:[#allocation0] sm:%s28]
    %s31 = ssub.s32 2, 1
    %32 = vst [vmem:[%s1] sm:%s31] %v29

// kernel: tile.28
$region0: #{tile.28}
  #allocation0 [shape = 's32[1]{0}', space=sflag, size = 0x4, scoped, tag = 'scoped memory for tile.28']
  %s0 = inlined_call_operand.vmem [shape: f32[64], index: 0, kind: input, shape index: {}]
  %s1 = inlined_call_operand.vmem [shape: f32[2,64], index: 1, kind: output, shape index: {}]
  // Predicated region
  $region2: #{tile.28} parent=0 // pred_check
    _
  $region3: #{tile.28} parent=0 // pred_check_branch
    %3 = sbr.rel (0) target = $region5
  $region4: #{tile.28} parent=0 // pred_region
    _
  $region5: #{tile.28} parent=0 // pred_fallthru
    _
  %v4 = vld [vmem:[%s0] ss:$0 sm:$0xff]
  %5 = vst [vmem:[%s1] sm:$0x3] %v4

// kernel: tile.29
$region0: #{tile.29}
  %s0 = inlined_call_operand.vmem [shape: f32[2,64], index: 0, kind: input, shape index: {}]
  %s1 = inlined_call_operand.vmem [shape: f32[1,128], index: 1, kind: output, shape index: {}]
  $region1: #{tile.29} parent=0
    #allocation0 [shape = 'u8[4096]{0}', space=vmem, size = 0x1000, scoped, tag = 'scoped mem for output reshape']
    #allocation1 [shape = 'u8[4096]{0}', space=vmem, size = 0x1000, scoped, tag = 'scoped mem for input reshape']
    %s3 = ssub.s32 4, 1
    %v4 = vld [vmem:[%s0] sm:%s3]
    %5 = vst [vmem:[#allocation1] sm:%s3] %v4
    %v6 = vld [vmem:[#allocation1] sm:$0x1]
    %vm7 = vcmask 523264
    %8 = vst.msk [vmem:[#allocation0] sm:$0x1] %vm7, %v6
    %s9 = scalar_lea.vmem [#allocation1], 1
    %v10 = vld [vmem:[%s9] sm:$0x1]
    %11 = vrot.lane.b32.xlu0 %v10, 64
    %v12 = vpop.permute.xlu0 %11
    %vm13 = vcmask 1048064
    %14 = vst.msk [vmem:[#allocation0] sm:$0x1] %vm13, %v12
    %s16 = ssub.s32 2, 1
    %v17 = vld [vmem:[#allocation0] sm:%s16]
    %s19 = ssub.s32 2, 1
    %20 = vst [vmem:[%s1] sm:%s19] %v17

// kernel: _lambda_.1
$region0: #{_lambda_.1}
  #allocation0 [shape = 'u32[]', space=smem, size = 0x4, offset = 0x4, fixed_abs, tag = 'smem constant byte address 0x4 - core index']
  #allocation1 [shape = 'u32[72,128]{1,0:T(1,128)}', space=vmem, size = 0x9000, scoped, tag = 'internal scratch']
  #allocation2 [shape = 'f32[2,10,128]{2,1,0:T(8,128)}', space=vmem, size = 0x4000, scoped, tag = 'scratch operand']
  #allocation3 [shape = 'f32[2,6,128]{2,1,0:T(8,128)}', space=vmem, size = 0x2000, scoped, tag = 'scratch operand']
  %s0 = inlined_call_operand.vmem [shape: f32[2,18,64], index: 0, kind: input, shape index: {}]
  %s1 = inlined_call_operand.vmem [shape: f32[3,64,128], index: 1, kind: input, shape index: {}]
  %s2 = inlined_call_operand.vmem [shape: f32[1,128], index: 2, kind: input, shape index: {}]
  %s3 = inlined_call_operand.vmem [shape: f32[3,128,128], index: 3, kind: input, shape index: {}]
  %s4 = inlined_call_operand.vmem [shape: f32[1,128], index: 4, kind: input, shape index: {}]
  %s5 = inlined_call_operand.vmem [shape: f32[3,128,128], index: 5, kind: input, shape index: {}]
  %s6 = inlined_call_operand.vmem [shape: f32[1,128], index: 6, kind: input, shape index: {}]
  %s7 = inlined_call_operand.vmem [shape: f32[2,8,128], index: 7, kind: output, shape index: {0}]
  %s8 = inlined_call_operand.vmem [shape: f32[2,4,128], index: 8, kind: output, shape index: {1}]
  %s9 = inlined_call_operand.vmem [shape: f32[2,2,128], index: 9, kind: output, shape index: {2}]
  %10 = xla_tuple %s7, %s8, %s9
  %s11 = sld [smem:[#allocation0]]
  $region54: #{_lambda_.1} parent=0
    _
  %s13 = ssub.s32 1, %s11
  %s14 = scalar_select 0, %s13, %s11
  // Predicated region
  $region2: #{_lambda_.1} parent=0 // pred_check
    _
  $region3: #{_lambda_.1} parent=0 // pred_check_branch
    %16 = sbr.rel (0) target = $region5
  $region4: #{_lambda_.1} parent=0 // pred_region
    _
  $region5: #{_lambda_.1} parent=0 // pred_fallthru
    _
  // Predicated region
  $region6: #{_lambda_.1} parent=0 // pred_check
    _
  $region7: #{_lambda_.1} parent=0 // pred_check_branch
    %18 = sbr.rel (0) target = $region9
  $region8: #{_lambda_.1} parent=0 // pred_region
    _
  $region9: #{_lambda_.1} parent=0 // pred_fallthru
    _
  // Predicated region
  $region10: #{_lambda_.1} parent=0 // pred_check
    _
  $region11: #{_lambda_.1} parent=0 // pred_check_branch
    %20 = sbr.rel (0) target = $region13
  $region12: #{_lambda_.1} parent=0 // pred_region
    _
  $region13: #{_lambda_.1} parent=0 // pred_fallthru
    _
  // Predicated region
  $region14: #{_lambda_.1} parent=0 // pred_check
    _
  $region15: #{_lambda_.1} parent=0 // pred_check_branch
    %22 = sbr.rel (0) target = $region17
  $region16: #{_lambda_.1} parent=0 // pred_region
    _
  $region17: #{_lambda_.1} parent=0 // pred_fallthru
    _
  // Predicated region
  $region18: #{_lambda_.1} parent=0 // pred_check
    _
  $region19: #{_lambda_.1} parent=0 // pred_check_branch
    %24 = sbr.rel (0) target = $region21
  $region20: #{_lambda_.1} parent=0 // pred_region
    _
  $region21: #{_lambda_.1} parent=0 // pred_fallthru
    _
  // Predicated region
  $region22: #{_lambda_.1} parent=0 // pred_check
    _
  $region23: #{_lambda_.1} parent=0 // pred_check_branch
    %26 = sbr.rel (0) target = $region25
  $region24: #{_lambda_.1} parent=0 // pred_region
    _
  $region25: #{_lambda_.1} parent=0 // pred_fallthru
    _
  // Predicated region
  $region26: #{_lambda_.1} parent=0 // pred_check
    _
  $region27: #{_lambda_.1} parent=0 // pred_check_branch
    %28 = sbr.rel (0) target = $region29
  $region28: #{_lambda_.1} parent=0 // pred_region
    _
  $region29: #{_lambda_.1} parent=0 // pred_fallthru
    _
  %29 = vst [vmem:[#allocation2] sm:$0xff] 0.0
  %30 = vst [vmem:[#allocation2 + $0x8] sm:$0x3] 0.0
  %31 = vst [vmem:[#allocation2 + $0x10] sm:$0xff] 0.0
  %32 = vst [vmem:[#allocation2 + $0x18] sm:$0x3] 0.0
  %33 = vst [vmem:[#allocation3] sm:$0x3f] 0.0
  %34 = vst [vmem:[#allocation3 + $0x8] sm:$0x3f] 0.0
  %v35 = vld [vmem:[%s0] sm:$0xff]
  %v36 = vld [vmem:[%s0 + $0x8] sm:$0xff]
  %v37 = vld [vmem:[%s1] sm:$0xff]
  %v38 = vld [vmem:[%s1 + $0x8] sm:$0xff]
  %v39 = vld [vmem:[%s1 + $0x10] sm:$0xff]
  %v40 = vld [vmem:[%s1 + $0x18] sm:$0xff]
  %v41 = vld [vmem:[%s1 + $0x20] sm:$0xff]
  %v42 = vld [vmem:[%s1 + $0x28] sm:$0xff]
  %v43 = vld [vmem:[%s1 + $0x30] sm:$0xff]
  %v44 = vld [vmem:[%s1 + $0x38] sm:$0xff]
  %v45 = vld [vmem:[%s0 + $0x1] sm:$0xff]
  %v46 = vld [vmem:[%s0 + $0x9] sm:$0xff]
  %s47 = scalar_lea.vmem %s1, 64
  %v48 = vld [vmem:[%s47] sm:$0xff]
  %v49 = vld [vmem:[%s47 + $0x8] sm:$0xff]
  %v50 = vld [vmem:[%s47 + $0x10] sm:$0xff]
  %v51 = vld [vmem:[%s47 + $0x18] sm:$0xff]
  %v52 = vld [vmem:[%s47 + $0x20] sm:$0xff]
  %v53 = vld [vmem:[%s47 + $0x28] sm:$0xff]
  %v54 = vld [vmem:[%s47 + $0x30] sm:$0xff]
  %v55 = vld [vmem:[%s47 + $0x38] sm:$0xff]
  %vm56 = vcmask 523264
  %v58 = vsel %vm56, %v45, 0
  %v61 = vsel %vm56, %v46, 0
  %63 = vmatpush.msra.mxu0 0.0
  %64 = vmatpush.msra.mxu0 0.0
  %65 = vmatpush.msra.mxu0 0.0
  %66 = vmatpush.msra.mxu0 0.0
  %67 = vmatpush.msra.mxu0 0.0
  %68 = vmatpush.msra.mxu0 0.0
  %69 = vmatpush.msra.mxu0 0.0
  %70 = vmatpush.msra.mxu0 0.0
  %71 = vmatpush.msra.mxu0 %v55
  %72 = vmatpush.msra.mxu0 %v54
  %73 = vmatpush.msra.mxu0 %v53
  %74 = vmatpush.msra.mxu0 %v52
  %75 = vmatpush.msra.mxu0 %v51
  %76 = vmatpush.msra.mxu0 %v50
  %77 = vmatpush.msra.mxu0 %v49
  %78 = vmatpush.msra.mxu0 %v48
  %79 = vmatmul.f32.gmra.mxu0 %v58
  %v80 = vpop.f32.mrf.mxu0
  %v81 = vadd.f32 0.0, %v80
  %82 = vmatmul.f32.gmra.mxu0 %v61
  %v83 = vpop.f32.mrf.mxu0
  %v84 = vadd.f32 0.0, %v83
  %85 = vdwg.mxu0
  %v87 = vsel %vm56, %v35, 0
  %v90 = vsel %vm56, %v36, 0
  %92 = vmatpush.msra.mxu0 0.0
  %93 = vmatpush.msra.mxu0 0.0
  %94 = vmatpush.msra.mxu0 0.0
  %95 = vmatpush.msra.mxu0 0.0
  %96 = vmatpush.msra.mxu0 0.0
  %97 = vmatpush.msra.mxu0 0.0
  %98 = vmatpush.msra.mxu0 0.0
  %99 = vmatpush.msra.mxu0 0.0
  %100 = vmatpush.msra.mxu0 %v44
  %101 = vmatpush.msra.mxu0 %v43
  %102 = vmatpush.msra.mxu0 %v42
  %103 = vmatpush.msra.mxu0 %v41
  %104 = vmatpush.msra.mxu0 %v40
  %105 = vmatpush.msra.mxu0 %v39
  %106 = vmatpush.msra.mxu0 %v38
  %107 = vmatpush.msra.mxu0 %v37
  %108 = vmatmul.f32.gmra.mxu0 %v87
  %v109 = vpop.f32.mrf.mxu0
  %v110 = vadd.f32 %v81, %v109
  %111 = vmatmul.f32.gmra.mxu0 %v90
  %v112 = vpop.f32.mrf.mxu0
  %v113 = vadd.f32 %v84, %v112
  %114 = vdwg.mxu0
  %v115 = vld [vmem:[%s0 + $0x2] sm:$0xff]
  %v116 = vld [vmem:[%s0 + $0xa] sm:$0xff]
  %s117 = scalar_lea.vmem %s1, 128
  %v118 = vld [vmem:[%s117] sm:$0xff]
  %v119 = vld [vmem:[%s117 + $0x8] sm:$0xff]
  %v120 = vld [vmem:[%s117 + $0x10] sm:$0xff]
  %v121 = vld [vmem:[%s117 + $0x18] sm:$0xff]
  %v122 = vld [vmem:[%s117 + $0x20] sm:$0xff]
  %v123 = vld [vmem:[%s117 + $0x28] sm:$0xff]
  %v124 = vld [vmem:[%s117 + $0x30] sm:$0xff]
  %v125 = vld [vmem:[%s117 + $0x38] sm:$0xff]
  %v127 = vsel %vm56, %v115, 0
  %v130 = vsel %vm56, %v116, 0
  %132 = vmatpush.msra.mxu0 0.0
  %133 = vmatpush.msra.mxu0 0.0
  %134 = vmatpush.msra.mxu0 0.0
  %135 = vmatpush.msra.mxu0 0.0
  %136 = vmatpush.msra.mxu0 0.0
  %137 = vmatpush.msra.mxu0 0.0
  %138 = vmatpush.msra.mxu0 0.0
  %139 = vmatpush.msra.mxu0 0.0
  %140 = vmatpush.msra.mxu0 %v125
  %141 = vmatpush.msra.mxu0 %v124
  %142 = vmatpush.msra.mxu0 %v123
  %143 = vmatpush.msra.mxu0 %v122
  %144 = vmatpush.msra.mxu0 %v121
  %145 = vmatpush.msra.mxu0 %v120
  %146 = vmatpush.msra.mxu0 %v119
  %147 = vmatpush.msra.mxu0 %v118
  %148 = vmatmul.f32.gmra.mxu0 %v127
  %v149 = vpop.f32.mrf.mxu0
  %v150 = vadd.f32 0.0, %v149
  %151 = vmatmul.f32.gmra.mxu0 %v130
  %v152 = vpop.f32.mrf.mxu0
  %v153 = vadd.f32 0.0, %v152
  %154 = vdwg.mxu0
  %v155 = vadd.f32 %v110, %v150
  %v156 = vadd.f32 %v113, %v153
  %v157 = vlaneseq
  %v158 = vshrl.u32 %v157, 7
  %v159 = vlaneseq
  %v160 = vand.u32 %v159, 127
  %v161 = vmul.u32 %v158, 2
  %vm162 = vcmp.eq.s32.totalorder %v160, %v161
  %v163 = vsel %vm162, 1.0, 0.0
  %v164 = vld [vmem:[%s2] sm:$0x1]
  %v166 = vperm.slane %v164, 0
  %vm168 = vcmask 130048
  %v170 = vsel %vm168, %v163, 0
  %172 = vmatpush.msra.mxu0 0.0
  %173 = vmatpush.msra.mxu0 0.0
  %174 = vmatpush.msra.mxu0 0.0
  %175 = vmatpush.msra.mxu0 0.0
  %176 = vmatpush.msra.mxu0 0.0
  %177 = vmatpush.msra.mxu0 0.0
  %178 = vmatpush.msra.mxu0 0.0
  %179 = vmatpush.msra.mxu0 0.0
  %180 = vmatpush.msra.mxu0 0.0
  %181 = vmatpush.msra.mxu0 0.0
  %182 = vmatpush.msra.mxu0 0.0
  %183 = vmatpush.msra.mxu0 0.0
  %184 = vmatpush.msra.mxu0 0.0
  %185 = vmatpush.msra.mxu0 0.0
  %186 = vmatpush.msra.mxu0 %v156
  %187 = vmatpush.msra.mxu0 %v155
  %188 = vmatmul.f32.gmra.mxu0 %v170
  %v189 = vpop.f32.mrf.mxu0
  %v190 = vadd.f32 %v166, %v189
  %191 = vdwg.mxu0
  %v192 = vmax.f32 %v190, 0.0
  %193 = vst [vmem:[%s7] sm:$0xff] %v192
  %194 = vst [vmem:[#allocation2 + $0x1] sm:$0xff] %v192
  %v195 = vld [vmem:[#allocation2] sm:$0xff]
  %v196 = vld [vmem:[%s3] sm:$0xff]
  %v197 = vld [vmem:[%s3 + $0x8] sm:$0xff]
  %v198 = vld [vmem:[%s3 + $0x10] sm:$0xff]
  %v199 = vld [vmem:[%s3 + $0x18] sm:$0xff]
  %v200 = vld [vmem:[%s3 + $0x20] sm:$0xff]
  %v201 = vld [vmem:[%s3 + $0x28] sm:$0xff]
  %v202 = vld [vmem:[%s3 + $0x30] sm:$0xff]
  %v203 = vld [vmem:[%s3 + $0x38] sm:$0xff]
  %v204 = vld [vmem:[%s3 + $0x40] sm:$0xff]
  %v205 = vld [vmem:[%s3 + $0x48] sm:$0xff]
  %v206 = vld [vmem:[%s3 + $0x50] sm:$0xff]
  %v207 = vld [vmem:[%s3 + $0x58] sm:$0xff]
  %v208 = vld [vmem:[%s3 + $0x60] sm:$0xff]
  %v209 = vld [vmem:[%s3 + $0x68] sm:$0xff]
  %v210 = vld [vmem:[%s3 + $0x70] sm:$0xff]
  %v211 = vld [vmem:[%s3 + $0x78] sm:$0xff]
  %v212 = vld [vmem:[#allocation2 + $0x1] sm:$0xff]
  %s213 = scalar_lea.vmem %s3, 128
  %v214 = vld [vmem:[%s213] sm:$0xff]
  %v215 = vld [vmem:[%s213 + $0x8] sm:$0xff]
  %v216 = vld [vmem:[%s213 + $0x10] sm:$0xff]
  %v217 = vld [vmem:[%s213 + $0x18] sm:$0xff]
  %v218 = vld [vmem:[%s213 + $0x20] sm:$0xff]
  %v219 = vld [vmem:[%s213 + $0x28] sm:$0xff]
  %v220 = vld [vmem:[%s213 + $0x30] sm:$0xff]
  %v221 = vld [vmem:[%s213 + $0x38] sm:$0xff]
  %v222 = vld [vmem:[%s213 + $0x40] sm:$0xff]
  %v223 = vld [vmem:[%s213 + $0x48] sm:$0xff]
  %v224 = vld [vmem:[%s213 + $0x50] sm:$0xff]
  %v225 = vld [vmem:[%s213 + $0x58] sm:$0xff]
  %v226 = vld [vmem:[%s213 + $0x60] sm:$0xff]
  %v227 = vld [vmem:[%s213 + $0x68] sm:$0xff]
  %v228 = vld [vmem:[%s213 + $0x70] sm:$0xff]
  %v229 = vld [vmem:[%s213 + $0x78] sm:$0xff]
  %230 = vmatpush.msra.mxu0 %v229
  %231 = vmatpush.msra.mxu0 %v228
  %232 = vmatpush.msra.mxu0 %v227
  %233 = vmatpush.msra.mxu0 %v226
  %234 = vmatpush.msra.mxu0 %v225
  %235 = vmatpush.msra.mxu0 %v224
  %236 = vmatpush.msra.mxu0 %v223
  %237 = vmatpush.msra.mxu0 %v222
  %238 = vmatpush.msra.mxu0 %v221
  %239 = vmatpush.msra.mxu0 %v220
  %240 = vmatpush.msra.mxu0 %v219
  %241 = vmatpush.msra.mxu0 %v218
  %242 = vmatpush.msra.mxu0 %v217
  %243 = vmatpush.msra.mxu0 %v216
  %244 = vmatpush.msra.mxu0 %v215
  %245 = vmatpush.msra.mxu0 %v214
  %246 = vmatmul.f32.gmra.mxu0 %v212
  %v247 = vpop.f32.mrf.mxu0
  %v248 = vadd.f32 0.0, %v247
  %249 = vdwg.mxu0
  %250 = vmatpush.msra.mxu0 %v211
  %251 = vmatpush.msra.mxu0 %v210
  %252 = vmatpush.msra.mxu0 %v209
  %253 = vmatpush.msra.mxu0 %v208
  %254 = vmatpush.msra.mxu0 %v207
  %255 = vmatpush.msra.mxu0 %v206
  %256 = vmatpush.msra.mxu0 %v205
  %257 = vmatpush.msra.mxu0 %v204
  %258 = vmatpush.msra.mxu0 %v203
  %259 = vmatpush.msra.mxu0 %v202
  %260 = vmatpush.msra.mxu0 %v201
  %261 = vmatpush.msra.mxu0 %v200
  %262 = vmatpush.msra.mxu0 %v199
  %263 = vmatpush.msra.mxu0 %v198
  %264 = vmatpush.msra.mxu0 %v197
  %265 = vmatpush.msra.mxu0 %v196
  %266 = vmatmul.f32.gmra.mxu0 %v195
  %v267 = vpop.f32.mrf.mxu0
  %v268 = vadd.f32 %v248, %v267
  %269 = vdwg.mxu0
  %v270 = vld [vmem:[#allocation2 + $0x2] sm:$0xff]
  %s271 = scalar_lea.vmem %s3, 256
  %v272 = vld [vmem:[%s271] sm:$0xff]
  %v273 = vld [vmem:[%s271 + $0x8] sm:$0xff]
  %v274 = vld [vmem:[%s271 + $0x10] sm:$0xff]
  %v275 = vld [vmem:[%s271 + $0x18] sm:$0xff]
  %v276 = vld [vmem:[%s271 + $0x20] sm:$0xff]
  %v277 = vld [vmem:[%s271 + $0x28] sm:$0xff]
  %v278 = vld [vmem:[%s271 + $0x30] sm:$0xff]
  %v279 = vld [vmem:[%s271 + $0x38] sm:$0xff]
  %v280 = vld [vmem:[%s271 + $0x40] sm:$0xff]
  %v281 = vld [vmem:[%s271 + $0x48] sm:$0xff]
  %v282 = vld [vmem:[%s271 + $0x50] sm:$0xff]
  %v283 = vld [vmem:[%s271 + $0x58] sm:$0xff]
  %v284 = vld [vmem:[%s271 + $0x60] sm:$0xff]
  %v285 = vld [vmem:[%s271 + $0x68] sm:$0xff]
  %v286 = vld [vmem:[%s271 + $0x70] sm:$0xff]
  %v287 = vld [vmem:[%s271 + $0x78] sm:$0xff]
  %288 = vmatpush.msra.mxu0 %v287
  %289 = vmatpush.msra.mxu0 %v286
  %290 = vmatpush.msra.mxu0 %v285
  %291 = vmatpush.msra.mxu0 %v284
  %292 = vmatpush.msra.mxu0 %v283
  %293 = vmatpush.msra.mxu0 %v282
  %294 = vmatpush.msra.mxu0 %v281
  %295 = vmatpush.msra.mxu0 %v280
  %296 = vmatpush.msra.mxu0 %v279
  %297 = vmatpush.msra.mxu0 %v278
  %298 = vmatpush.msra.mxu0 %v277
  %299 = vmatpush.msra.mxu0 %v276
  %300 = vmatpush.msra.mxu0 %v275
  %301 = vmatpush.msra.mxu0 %v274
  %302 = vmatpush.msra.mxu0 %v273
  %303 = vmatpush.msra.mxu0 %v272
  %304 = vmatmul.f32.gmra.mxu0 %v270
  %v305 = vpop.f32.mrf.mxu0
  %v306 = vadd.f32 0.0, %v305
  %307 = vdwg.mxu0
  %v308 = vadd.f32 %v268, %v306
  %v309 = vld [vmem:[%s4] sm:$0x1]
  %v311 = vperm.slane %v309, 0
  %vm313 = vcmask 64512
  %v314 = vsel %vm313, %v163, 0
  %316 = vmatpush.msra.mxu0 0.0
  %317 = vmatpush.msra.mxu0 0.0
  %318 = vmatpush.msra.mxu0 0.0
  %319 = vmatpush.msra.mxu0 0.0
  %320 = vmatpush.msra.mxu0 0.0
  %321 = vmatpush.msra.mxu0 0.0
  %322 = vmatpush.msra.mxu0 0.0
  %323 = vmatpush.msra.mxu0 0.0
  %324 = vmatpush.msra.mxu0 0.0
  %325 = vmatpush.msra.mxu0 0.0
  %326 = vmatpush.msra.mxu0 0.0
  %327 = vmatpush.msra.mxu0 0.0
  %328 = vmatpush.msra.mxu0 0.0
  %329 = vmatpush.msra.mxu0 0.0
  %330 = vmatpush.msra.mxu0 0.0
  %331 = vmatpush.msra.mxu0 %v308
  %332 = vmatmul.f32.gmra.mxu0 %v314
  %v333 = vpop.f32.mrf.mxu0
  %v334 = vadd.f32 %v311, %v333
  %335 = vdwg.mxu0
  %v336 = vmax.f32 %v334, 0.0
  %337 = vst [vmem:[%s8] sm:$0xf] %v336
  %338 = vst [vmem:[#allocation3 + $0x1] sm:$0xf] %v336
  %v339 = vld [vmem:[#allocation3] sm:$0xf]
  %v340 = vld [vmem:[%s5] sm:$0xff]
  %v341 = vld [vmem:[%s5 + $0x8] sm:$0xff]
  %v342 = vld [vmem:[%s5 + $0x10] sm:$0xff]
  %v343 = vld [vmem:[%s5 + $0x18] sm:$0xff]
  %v344 = vld [vmem:[%s5 + $0x20] sm:$0xff]
  %v345 = vld [vmem:[%s5 + $0x28] sm:$0xff]
  %v346 = vld [vmem:[%s5 + $0x30] sm:$0xff]
  %v347 = vld [vmem:[%s5 + $0x38] sm:$0xff]
  %v348 = vld [vmem:[%s5 + $0x40] sm:$0xff]
  %v349 = vld [vmem:[%s5 + $0x48] sm:$0xff]
  %v350 = vld [vmem:[%s5 + $0x50] sm:$0xff]
  %v351 = vld [vmem:[%s5 + $0x58] sm:$0xff]
  %v352 = vld [vmem:[%s5 + $0x60] sm:$0xff]
  %v353 = vld [vmem:[%s5 + $0x68] sm:$0xff]
  %v354 = vld [vmem:[%s5 + $0x70] sm:$0xff]
  %v355 = vld [vmem:[%s5 + $0x78] sm:$0xff]
  %v356 = vld [vmem:[#allocation3 + $0x1] sm:$0xf]
  %s357 = scalar_lea.vmem %s5, 128
  %v358 = vld [vmem:[%s357] sm:$0xff]
  %v359 = vld [vmem:[%s357 + $0x8] sm:$0xff]
  %v360 = vld [vmem:[%s357 + $0x10] sm:$0xff]
  %v361 = vld [vmem:[%s357 + $0x18] sm:$0xff]
  %v362 = vld [vmem:[%s357 + $0x20] sm:$0xff]
  %v363 = vld [vmem:[%s357 + $0x28] sm:$0xff]
  %v364 = vld [vmem:[%s357 + $0x30] sm:$0xff]
  %v365 = vld [vmem:[%s357 + $0x38] sm:$0xff]
  %v366 = vld [vmem:[%s357 + $0x40] sm:$0xff]
  %v367 = vld [vmem:[%s357 + $0x48] sm:$0xff]
  %v368 = vld [vmem:[%s357 + $0x50] sm:$0xff]
  %v369 = vld [vmem:[%s357 + $0x58] sm:$0xff]
  %v370 = vld [vmem:[%s357 + $0x60] sm:$0xff]
  %v371 = vld [vmem:[%s357 + $0x68] sm:$0xff]
  %v372 = vld [vmem:[%s357 + $0x70] sm:$0xff]
  %v373 = vld [vmem:[%s357 + $0x78] sm:$0xff]
  %374 = vmatpush.msra.mxu0 %v373
  %375 = vmatpush.msra.mxu0 %v372
  %376 = vmatpush.msra.mxu0 %v371
  %377 = vmatpush.msra.mxu0 %v370
  %378 = vmatpush.msra.mxu0 %v369
  %379 = vmatpush.msra.mxu0 %v368
  %380 = vmatpush.msra.mxu0 %v367
  %381 = vmatpush.msra.mxu0 %v366
  %382 = vmatpush.msra.mxu0 %v365
  %383 = vmatpush.msra.mxu0 %v364
  %384 = vmatpush.msra.mxu0 %v363
  %385 = vmatpush.msra.mxu0 %v362
  %386 = vmatpush.msra.mxu0 %v361
  %387 = vmatpush.msra.mxu0 %v360
  %388 = vmatpush.msra.mxu0 %v359
  %389 = vmatpush.msra.mxu0 %v358
  %390 = vmatmul.f32.gmra.mxu0 %v356
  %v391 = vpop.f32.mrf.mxu0
  %v392 = vadd.f32 0.0, %v391
  %393 = vdwg.mxu0
  %394 = vmatpush.msra.mxu0 %v355
  %395 = vmatpush.msra.mxu0 %v354
  %396 = vmatpush.msra.mxu0 %v353
  %397 = vmatpush.msra.mxu0 %v352
  %398 = vmatpush.msra.mxu0 %v351
  %399 = vmatpush.msra.mxu0 %v350
  %400 = vmatpush.msra.mxu0 %v349
  %401 = vmatpush.msra.mxu0 %v348
  %402 = vmatpush.msra.mxu0 %v347
  %403 = vmatpush.msra.mxu0 %v346
  %404 = vmatpush.msra.mxu0 %v345
  %405 = vmatpush.msra.mxu0 %v344
  %406 = vmatpush.msra.mxu0 %v343
  %407 = vmatpush.msra.mxu0 %v342
  %408 = vmatpush.msra.mxu0 %v341
  %409 = vmatpush.msra.mxu0 %v340
  %410 = vmatmul.f32.gmra.mxu0 %v339
  %v411 = vpop.f32.mrf.mxu0
  %v412 = vadd.f32 %v392, %v411
  %413 = vdwg.mxu0
  %v414 = vld [vmem:[#allocation3 + $0x2] sm:$0xf]
  %s415 = scalar_lea.vmem %s5, 256
  %v416 = vld [vmem:[%s415] sm:$0xff]
  %v417 = vld [vmem:[%s415 + $0x8] sm:$0xff]
  %v418 = vld [vmem:[%s415 + $0x10] sm:$0xff]
  %v419 = vld [vmem:[%s415 + $0x18] sm:$0xff]
  %v420 = vld [vmem:[%s415 + $0x20] sm:$0xff]
  %v421 = vld [vmem:[%s415 + $0x28] sm:$0xff]
  %v422 = vld [vmem:[%s415 + $0x30] sm:$0xff]
  %v423 = vld [vmem:[%s415 + $0x38] sm:$0xff]
  %v424 = vld [vmem:[%s415 + $0x40] sm:$0xff]
  %v425 = vld [vmem:[%s415 + $0x48] sm:$0xff]
  %v426 = vld [vmem:[%s415 + $0x50] sm:$0xff]
  %v427 = vld [vmem:[%s415 + $0x58] sm:$0xff]
  %v428 = vld [vmem:[%s415 + $0x60] sm:$0xff]
  %v429 = vld [vmem:[%s415 + $0x68] sm:$0xff]
  %v430 = vld [vmem:[%s415 + $0x70] sm:$0xff]
  %v431 = vld [vmem:[%s415 + $0x78] sm:$0xff]
  %432 = vmatpush.msra.mxu0 %v431
  %433 = vmatpush.msra.mxu0 %v430
  %434 = vmatpush.msra.mxu0 %v429
  %435 = vmatpush.msra.mxu0 %v428
  %436 = vmatpush.msra.mxu0 %v427
  %437 = vmatpush.msra.mxu0 %v426
  %438 = vmatpush.msra.mxu0 %v425
  %439 = vmatpush.msra.mxu0 %v424
  %440 = vmatpush.msra.mxu0 %v423
  %441 = vmatpush.msra.mxu0 %v422
  %442 = vmatpush.msra.mxu0 %v421
  %443 = vmatpush.msra.mxu0 %v420
  %444 = vmatpush.msra.mxu0 %v419
  %445 = vmatpush.msra.mxu0 %v418
  %446 = vmatpush.msra.mxu0 %v417
  %447 = vmatpush.msra.mxu0 %v416
  %448 = vmatmul.f32.gmra.mxu0 %v414
  %v449 = vpop.f32.mrf.mxu0
  %v450 = vadd.f32 0.0, %v449
  %451 = vdwg.mxu0
  %v452 = vadd.f32 %v412, %v450
  %v453 = vld [vmem:[%s6] sm:$0x1]
  %v455 = vperm.slane %v453, 0
  %vm457 = vcmask 31744
  %v458 = vsel %vm457, %v163, 0
  %vm460 = vcmask 1043456
  %v462 = vsel %vm460, %v452, 0
  %464 = vmatpush.msra.mxu0 0.0
  %465 = vmatpush.msra.mxu0 0.0
  %466 = vmatpush.msra.mxu0 0.0
  %467 = vmatpush.msra.mxu0 0.0
  %468 = vmatpush.msra.mxu0 0.0
  %469 = vmatpush.msra.mxu0 0.0
  %470 = vmatpush.msra.mxu0 0.0
  %471 = vmatpush.msra.mxu0 0.0
  %472 = vmatpush.msra.mxu0 0.0
  %473 = vmatpush.msra.mxu0 0.0
  %474 = vmatpush.msra.mxu0 0.0
  %475 = vmatpush.msra.mxu0 0.0
  %476 = vmatpush.msra.mxu0 0.0
  %477 = vmatpush.msra.mxu0 0.0
  %478 = vmatpush.msra.mxu0 0.0
  %479 = vmatpush.msra.mxu0 %v462
  %480 = vmatmul.f32.gmra.mxu0 %v458
  %v481 = vpop.f32.mrf.mxu0
  %v482 = vadd.f32 %v455, %v481
  %483 = vdwg.mxu0
  %v484 = vmax.f32 %v482, 0.0
  %485 = vst [vmem:[%s9] sm:$0x3] %v484
  %s486 = scalar_lea.vmem %s0, 24
  %v487 = vld [vmem:[%s486] sm:$0xff]
  %v488 = vld [vmem:[%s486 + $0x8] sm:$0xff]
  %v489 = vld [vmem:[%s1] sm:$0xff]
  %v490 = vld [vmem:[%s1 + $0x8] sm:$0xff]
  %v491 = vld [vmem:[%s1 + $0x10] sm:$0xff]
  %v492 = vld [vmem:[%s1 + $0x18] sm:$0xff]
  %v493 = vld [vmem:[%s1 + $0x20] sm:$0xff]
  %v494 = vld [vmem:[%s1 + $0x28] sm:$0xff]
  %v495 = vld [vmem:[%s1 + $0x30] sm:$0xff]
  %v496 = vld [vmem:[%s1 + $0x38] sm:$0xff]
  %v497 = vld [vmem:[%s486 + $0x1] sm:$0xff]
  %v498 = vld [vmem:[%s486 + $0x9] sm:$0xff]
  %v499 = vld [vmem:[%s47] sm:$0xff]
  %v500 = vld [vmem:[%s47 + $0x8] sm:$0xff]
  %v501 = vld [vmem:[%s47 + $0x10] sm:$0xff]
  %v502 = vld [vmem:[%s47 + $0x18] sm:$0xff]
  %v503 = vld [vmem:[%s47 + $0x20] sm:$0xff]
  %v504 = vld [vmem:[%s47 + $0x28] sm:$0xff]
  %v505 = vld [vmem:[%s47 + $0x30] sm:$0xff]
  %v506 = vld [vmem:[%s47 + $0x38] sm:$0xff]
  %v508 = vsel %vm56, %v497, 0
  %v511 = vsel %vm56, %v498, 0
  %513 = vmatpush.msra.mxu0 0.0
  %514 = vmatpush.msra.mxu0 0.0
  %515 = vmatpush.msra.mxu0 0.0
  %516 = vmatpush.msra.mxu0 0.0
  %517 = vmatpush.msra.mxu0 0.0
  %518 = vmatpush.msra.mxu0 0.0
  %519 = vmatpush.msra.mxu0 0.0
  %520 = vmatpush.msra.mxu0 0.0
  %521 = vmatpush.msra.mxu0 %v506
  %522 = vmatpush.msra.mxu0 %v505
  %523 = vmatpush.msra.mxu0 %v504
  %524 = vmatpush.msra.mxu0 %v503
  %525 = vmatpush.msra.mxu0 %v502
  %526 = vmatpush.msra.mxu0 %v501
  %527 = vmatpush.msra.mxu0 %v500
  %528 = vmatpush.msra.mxu0 %v499
  %529 = vmatmul.f32.gmra.mxu0 %v508
  %v530 = vpop.f32.mrf.mxu0
  %v531 = vadd.f32 0.0, %v530
  %532 = vmatmul.f32.gmra.mxu0 %v511
  %v533 = vpop.f32.mrf.mxu0
  %v534 = vadd.f32 0.0, %v533
  %535 = vdwg.mxu0
  %v537 = vsel %vm56, %v487, 0
  %v540 = vsel %vm56, %v488, 0
  %542 = vmatpush.msra.mxu0 0.0
  %543 = vmatpush.msra.mxu0 0.0
  %544 = vmatpush.msra.mxu0 0.0
  %545 = vmatpush.msra.mxu0 0.0
  %546 = vmatpush.msra.mxu0 0.0
  %547 = vmatpush.msra.mxu0 0.0
  %548 = vmatpush.msra.mxu0 0.0
  %549 = vmatpush.msra.mxu0 0.0
  %550 = vmatpush.msra.mxu0 %v496
  %551 = vmatpush.msra.mxu0 %v495
  %552 = vmatpush.msra.mxu0 %v494
  %553 = vmatpush.msra.mxu0 %v493
  %554 = vmatpush.msra.mxu0 %v492
  %555 = vmatpush.msra.mxu0 %v491
  %556 = vmatpush.msra.mxu0 %v490
  %557 = vmatpush.msra.mxu0 %v489
  %558 = vmatmul.f32.gmra.mxu0 %v537
  %v559 = vpop.f32.mrf.mxu0
  %v560 = vadd.f32 %v531, %v559
  %561 = vmatmul.f32.gmra.mxu0 %v540
  %v562 = vpop.f32.mrf.mxu0
  %v563 = vadd.f32 %v534, %v562
  %564 = vdwg.mxu0
  %v565 = vld [vmem:[%s486 + $0x2] sm:$0xff]
  %v566 = vld [vmem:[%s486 + $0xa] sm:$0xff]
  %v567 = vld [vmem:[%s117] sm:$0xff]
  %v568 = vld [vmem:[%s117 + $0x8] sm:$0xff]
  %v569 = vld [vmem:[%s117 + $0x10] sm:$0xff]
  %v570 = vld [vmem:[%s117 + $0x18] sm:$0xff]
  %v571 = vld [vmem:[%s117 + $0x20] sm:$0xff]
  %v572 = vld [vmem:[%s117 + $0x28] sm:$0xff]
  %v573 = vld [vmem:[%s117 + $0x30] sm:$0xff]
  %v574 = vld [vmem:[%s117 + $0x38] sm:$0xff]
  %v576 = vsel %vm56, %v565, 0
  %v579 = vsel %vm56, %v566, 0
  %581 = vmatpush.msra.mxu0 0.0
  %582 = vmatpush.msra.mxu0 0.0
  %583 = vmatpush.msra.mxu0 0.0
  %584 = vmatpush.msra.mxu0 0.0
  %585 = vmatpush.msra.mxu0 0.0
  %586 = vmatpush.msra.mxu0 0.0
  %587 = vmatpush.msra.mxu0 0.0
  %588 = vmatpush.msra.mxu0 0.0
  %589 = vmatpush.msra.mxu0 %v574
  %590 = vmatpush.msra.mxu0 %v573
  %591 = vmatpush.msra.mxu0 %v572
  %592 = vmatpush.msra.mxu0 %v571
  %593 = vmatpush.msra.mxu0 %v570
  %594 = vmatpush.msra.mxu0 %v569
  %595 = vmatpush.msra.mxu0 %v568
  %596 = vmatpush.msra.mxu0 %v567
  %597 = vmatmul.f32.gmra.mxu0 %v576
  %v598 = vpop.f32.mrf.mxu0
  %v599 = vadd.f32 0.0, %v598
  %600 = vmatmul.f32.gmra.mxu0 %v579
  %v601 = vpop.f32.mrf.mxu0
  %v602 = vadd.f32 0.0, %v601
  %603 = vdwg.mxu0
  %v604 = vadd.f32 %v560, %v599
  %v605 = vadd.f32 %v563, %v602
  %v606 = vld [vmem:[%s2] sm:$0x1]
  %v608 = vperm.slane %v606, 0
  %610 = vmatpush.msra.mxu0 0.0
  %611 = vmatpush.msra.mxu0 0.0
  %612 = vmatpush.msra.mxu0 0.0
  %613 = vmatpush.msra.mxu0 0.0
  %614 = vmatpush.msra.mxu0 0.0
  %615 = vmatpush.msra.mxu0 0.0
  %616 = vmatpush.msra.mxu0 0.0
  %617 = vmatpush.msra.mxu0 0.0
  %618 = vmatpush.msra.mxu0 0.0
  %619 = vmatpush.msra.mxu0 0.0
  %620 = vmatpush.msra.mxu0 0.0
  %621 = vmatpush.msra.mxu0 0.0
  %622 = vmatpush.msra.mxu0 0.0
  %623 = vmatpush.msra.mxu0 0.0
  %624 = vmatpush.msra.mxu0 %v605
  %625 = vmatpush.msra.mxu0 %v604
  %626 = vmatmul.f32.gmra.mxu0 %v170
  %v627 = vpop.f32.mrf.mxu0
  %v628 = vadd.f32 %v608, %v627
  %629 = vdwg.mxu0
  %v630 = vmax.f32 %v628, 0.0
  %s631 = scalar_lea.vmem %s7, 8
  %632 = vst [vmem:[%s631] sm:$0xff] %v630
  %s633 = scalar_lea.vmem [#allocation2], 16
  %634 = vst [vmem:[%s633 + $0x1] sm:$0xff] %v630
  %v635 = vld [vmem:[%s633] sm:$0xff]
  %v636 = vld [vmem:[%s3] sm:$0xff]
  %v637 = vld [vmem:[%s3 + $0x8] sm:$0xff]
  %v638 = vld [vmem:[%s3 + $0x10] sm:$0xff]
  %v639 = vld [vmem:[%s3 + $0x18] sm:$0xff]
  %v640 = vld [vmem:[%s3 + $0x20] sm:$0xff]
  %v641 = vld [vmem:[%s3 + $0x28] sm:$0xff]
  %v642 = vld [vmem:[%s3 + $0x30] sm:$0xff]
  %v643 = vld [vmem:[%s3 + $0x38] sm:$0xff]
  %v644 = vld [vmem:[%s3 + $0x40] sm:$0xff]
  %v645 = vld [vmem:[%s3 + $0x48] sm:$0xff]
  %v646 = vld [vmem:[%s3 + $0x50] sm:$0xff]
  %v647 = vld [vmem:[%s3 + $0x58] sm:$0xff]
  %v648 = vld [vmem:[%s3 + $0x60] sm:$0xff]
  %v649 = vld [vmem:[%s3 + $0x68] sm:$0xff]
  %v650 = vld [vmem:[%s3 + $0x70] sm:$0xff]
  %v651 = vld [vmem:[%s3 + $0x78] sm:$0xff]
  %v652 = vld [vmem:[%s633 + $0x1] sm:$0xff]
  %v653 = vld [vmem:[%s213] sm:$0xff]
  %v654 = vld [vmem:[%s213 + $0x8] sm:$0xff]
  %v655 = vld [vmem:[%s213 + $0x10] sm:$0xff]
  %v656 = vld [vmem:[%s213 + $0x18] sm:$0xff]
  %v657 = vld [vmem:[%s213 + $0x20] sm:$0xff]
  %v658 = vld [vmem:[%s213 + $0x28] sm:$0xff]
  %v659 = vld [vmem:[%s213 + $0x30] sm:$0xff]
  %v660 = vld [vmem:[%s213 + $0x38] sm:$0xff]
  %v661 = vld [vmem:[%s213 + $0x40] sm:$0xff]
  %v662 = vld [vmem:[%s213 + $0x48] sm:$0xff]
  %v663 = vld [vmem:[%s213 + $0x50] sm:$0xff]
  %v664 = vld [vmem:[%s213 + $0x58] sm:$0xff]
  %v665 = vld [vmem:[%s213 + $0x60] sm:$0xff]
  %v666 = vld [vmem:[%s213 + $0x68] sm:$0xff]
  %v667 = vld [vmem:[%s213 + $0x70] sm:$0xff]
  %v668 = vld [vmem:[%s213 + $0x78] sm:$0xff]
  %669 = vmatpush.msra.mxu0 %v668
  %670 = vmatpush.msra.mxu0 %v667
  %671 = vmatpush.msra.mxu0 %v666
  %672 = vmatpush.msra.mxu0 %v665
  %673 = vmatpush.msra.mxu0 %v664
  %674 = vmatpush.msra.mxu0 %v663
  %675 = vmatpush.msra.mxu0 %v662
  %676 = vmatpush.msra.mxu0 %v661
  %677 = vmatpush.msra.mxu0 %v660
  %678 = vmatpush.msra.mxu0 %v659
  %679 = vmatpush.msra.mxu0 %v658
  %680 = vmatpush.msra.mxu0 %v657
  %681 = vmatpush.msra.mxu0 %v656
  %682 = vmatpush.msra.mxu0 %v655
  %683 = vmatpush.msra.mxu0 %v654
  %684 = vmatpush.msra.mxu0 %v653
  %685 = vmatmul.f32.gmra.mxu0 %v652
  %v686 = vpop.f32.mrf.mxu0
  %v687 = vadd.f32 0.0, %v686
  %688 = vdwg.mxu0
  %689 = vmatpush.msra.mxu0 %v651
  %690 = vmatpush.msra.mxu0 %v650
  %691 = vmatpush.msra.mxu0 %v649
  %692 = vmatpush.msra.mxu0 %v648
  %693 = vmatpush.msra.mxu0 %v647
  %694 = vmatpush.msra.mxu0 %v646
  %695 = vmatpush.msra.mxu0 %v645
  %696 = vmatpush.msra.mxu0 %v644
  %697 = vmatpush.msra.mxu0 %v643
  %698 = vmatpush.msra.mxu0 %v642
  %699 = vmatpush.msra.mxu0 %v641
  %700 = vmatpush.msra.mxu0 %v640
  %701 = vmatpush.msra.mxu0 %v639
  %702 = vmatpush.msra.mxu0 %v638
  %703 = vmatpush.msra.mxu0 %v637
  %704 = vmatpush.msra.mxu0 %v636
  %705 = vmatmul.f32.gmra.mxu0 %v635
  %v706 = vpop.f32.mrf.mxu0
  %v707 = vadd.f32 %v687, %v706
  %708 = vdwg.mxu0
  %v709 = vld [vmem:[%s633 + $0x2] sm:$0xff]
  %v710 = vld [vmem:[%s271] sm:$0xff]
  %v711 = vld [vmem:[%s271 + $0x8] sm:$0xff]
  %v712 = vld [vmem:[%s271 + $0x10] sm:$0xff]
  %v713 = vld [vmem:[%s271 + $0x18] sm:$0xff]
  %v714 = vld [vmem:[%s271 + $0x20] sm:$0xff]
  %v715 = vld [vmem:[%s271 + $0x28] sm:$0xff]
  %v716 = vld [vmem:[%s271 + $0x30] sm:$0xff]
  %v717 = vld [vmem:[%s271 + $0x38] sm:$0xff]
  %v718 = vld [vmem:[%s271 + $0x40] sm:$0xff]
  %v719 = vld [vmem:[%s271 + $0x48] sm:$0xff]
  %v720 = vld [vmem:[%s271 + $0x50] sm:$0xff]
  %v721 = vld [vmem:[%s271 + $0x58] sm:$0xff]
  %v722 = vld [vmem:[%s271 + $0x60] sm:$0xff]
  %v723 = vld [vmem:[%s271 + $0x68] sm:$0xff]
  %v724 = vld [vmem:[%s271 + $0x70] sm:$0xff]
  %v725 = vld [vmem:[%s271 + $0x78] sm:$0xff]
  %726 = vmatpush.msra.mxu0 %v725
  %727 = vmatpush.msra.mxu0 %v724
  %728 = vmatpush.msra.mxu0 %v723
  %729 = vmatpush.msra.mxu0 %v722
  %730 = vmatpush.msra.mxu0 %v721
  %731 = vmatpush.msra.mxu0 %v720
  %732 = vmatpush.msra.mxu0 %v719
  %733 = vmatpush.msra.mxu0 %v718
  %734 = vmatpush.msra.mxu0 %v717
  %735 = vmatpush.msra.mxu0 %v716
  %736 = vmatpush.msra.mxu0 %v715
  %737 = vmatpush.msra.mxu0 %v714
  %738 = vmatpush.msra.mxu0 %v713
  %739 = vmatpush.msra.mxu0 %v712
  %740 = vmatpush.msra.mxu0 %v711
  %741 = vmatpush.msra.mxu0 %v710
  %742 = vmatmul.f32.gmra.mxu0 %v709
  %v743 = vpop.f32.mrf.mxu0
  %v744 = vadd.f32 0.0, %v743
  %745 = vdwg.mxu0
  %v746 = vadd.f32 %v707, %v744
  %v747 = vld [vmem:[%s4] sm:$0x1]
  %v749 = vperm.slane %v747, 0
  %751 = vmatpush.msra.mxu0 0.0
  %752 = vmatpush.msra.mxu0 0.0
  %753 = vmatpush.msra.mxu0 0.0
  %754 = vmatpush.msra.mxu0 0.0
  %755 = vmatpush.msra.mxu0 0.0
  %756 = vmatpush.msra.mxu0 0.0
  %757 = vmatpush.msra.mxu0 0.0
  %758 = vmatpush.msra.mxu0 0.0
  %759 = vmatpush.msra.mxu0 0.0
  %760 = vmatpush.msra.mxu0 0.0
  %761 = vmatpush.msra.mxu0 0.0
  %762 = vmatpush.msra.mxu0 0.0
  %763 = vmatpush.msra.mxu0 0.0
  %764 = vmatpush.msra.mxu0 0.0
  %765 = vmatpush.msra.mxu0 0.0
  %766 = vmatpush.msra.mxu0 %v746
  %767 = vmatmul.f32.gmra.mxu0 %v314
  %v768 = vpop.f32.mrf.mxu0
  %v769 = vadd.f32 %v749, %v768
  %770 = vdwg.mxu0
  %v771 = vmax.f32 %v769, 0.0
  %s772 = scalar_lea.vmem %s8, 4
  %773 = vst [vmem:[%s772] sm:$0xf] %v771
  %s774 = scalar_lea.vmem [#allocation3], 8
  %775 = vst [vmem:[%s774 + $0x1] sm:$0xf] %v771
  %v776 = vld [vmem:[%s774] sm:$0xf]
  %v777 = vld [vmem:[%s5] sm:$0xff]
  %v778 = vld [vmem:[%s5 + $0x8] sm:$0xff]
  %v779 = vld [vmem:[%s5 + $0x10] sm:$0xff]
  %v780 = vld [vmem:[%s5 + $0x18] sm:$0xff]
  %v781 = vld [vmem:[%s5 + $0x20] sm:$0xff]
  %v782 = vld [vmem:[%s5 + $0x28] sm:$0xff]
  %v783 = vld [vmem:[%s5 + $0x30] sm:$0xff]
  %v784 = vld [vmem:[%s5 + $0x38] sm:$0xff]
  %v785 = vld [vmem:[%s5 + $0x40] sm:$0xff]
  %v786 = vld [vmem:[%s5 + $0x48] sm:$0xff]
  %v787 = vld [vmem:[%s5 + $0x50] sm:$0xff]
  %v788 = vld [vmem:[%s5 + $0x58] sm:$0xff]
  %v789 = vld [vmem:[%s5 + $0x60] sm:$0xff]
  %v790 = vld [vmem:[%s5 + $0x68] sm:$0xff]
  %v791 = vld [vmem:[%s5 + $0x70] sm:$0xff]
  %v792 = vld [vmem:[%s5 + $0x78] sm:$0xff]
  %v793 = vld [vmem:[%s774 + $0x1] sm:$0xf]
  %v794 = vld [vmem:[%s357] sm:$0xff]
  %v795 = vld [vmem:[%s357 + $0x8] sm:$0xff]
  %v796 = vld [vmem:[%s357 + $0x10] sm:$0xff]
  %v797 = vld [vmem:[%s357 + $0x18] sm:$0xff]
  %v798 = vld [vmem:[%s357 + $0x20] sm:$0xff]
  %v799 = vld [vmem:[%s357 + $0x28] sm:$0xff]
  %v800 = vld [vmem:[%s357 + $0x30] sm:$0xff]
  %v801 = vld [vmem:[%s357 + $0x38] sm:$0xff]
  %v802 = vld [vmem:[%s357 + $0x40] sm:$0xff]
  %v803 = vld [vmem:[%s357 + $0x48] sm:$0xff]
  %v804 = vld [vmem:[%s357 + $0x50] sm:$0xff]
  %v805 = vld [vmem:[%s357 + $0x58] sm:$0xff]
  %v806 = vld [vmem:[%s357 + $0x60] sm:$0xff]
  %v807 = vld [vmem:[%s357 + $0x68] sm:$0xff]
  %v808 = vld [vmem:[%s357 + $0x70] sm:$0xff]
  %v809 = vld [vmem:[%s357 + $0x78] sm:$0xff]
  %810 = vmatpush.msra.mxu0 %v809
  %811 = vmatpush.msra.mxu0 %v808
  %812 = vmatpush.msra.mxu0 %v807
  %813 = vmatpush.msra.mxu0 %v806
  %814 = vmatpush.msra.mxu0 %v805
  %815 = vmatpush.msra.mxu0 %v804
  %816 = vmatpush.msra.mxu0 %v803
  %817 = vmatpush.msra.mxu0 %v802
  %818 = vmatpush.msra.mxu0 %v801
  %819 = vmatpush.msra.mxu0 %v800
  %820 = vmatpush.msra.mxu0 %v799
  %821 = vmatpush.msra.mxu0 %v798
  %822 = vmatpush.msra.mxu0 %v797
  %823 = vmatpush.msra.mxu0 %v796
  %824 = vmatpush.msra.mxu0 %v795
  %825 = vmatpush.msra.mxu0 %v794
  %826 = vmatmul.f32.gmra.mxu0 %v793
  %v827 = vpop.f32.mrf.mxu0
  %v828 = vadd.f32 0.0, %v827
  %829 = vdwg.mxu0
  %830 = vmatpush.msra.mxu0 %v792
  %831 = vmatpush.msra.mxu0 %v791
  %832 = vmatpush.msra.mxu0 %v790
  %833 = vmatpush.msra.mxu0 %v789
  %834 = vmatpush.msra.mxu0 %v788
  %835 = vmatpush.msra.mxu0 %v787
  %836 = vmatpush.msra.mxu0 %v786
  %837 = vmatpush.msra.mxu0 %v785
  %838 = vmatpush.msra.mxu0 %v784
  %839 = vmatpush.msra.mxu0 %v783
  %840 = vmatpush.msra.mxu0 %v782
  %841 = vmatpush.msra.mxu0 %v781
  %842 = vmatpush.msra.mxu0 %v780
  %843 = vmatpush.msra.mxu0 %v779
  %844 = vmatpush.msra.mxu0 %v778
  %845 = vmatpush.msra.mxu0 %v777
  %846 = vmatmul.f32.gmra.mxu0 %v776
  %v847 = vpop.f32.mrf.mxu0
  %v848 = vadd.f32 %v828, %v847
  %849 = vdwg.mxu0
  %v850 = vld [vmem:[%s774 + $0x2] sm:$0xf]
  %v851 = vld [vmem:[%s415] sm:$0xff]
  %v852 = vld [vmem:[%s415 + $0x8] sm:$0xff]
  %v853 = vld [vmem:[%s415 + $0x10] sm:$0xff]
  %v854 = vld [vmem:[%s415 + $0x18] sm:$0xff]
  %v855 = vld [vmem:[%s415 + $0x20] sm:$0xff]
  %v856 = vld [vmem:[%s415 + $0x28] sm:$0xff]
  %v857 = vld [vmem:[%s415 + $0x30] sm:$0xff]
  %v858 = vld [vmem:[%s415 + $0x38] sm:$0xff]
  %v859 = vld [vmem:[%s415 + $0x40] sm:$0xff]
  %v860 = vld [vmem:[%s415 + $0x48] sm:$0xff]
  %v861 = vld [vmem:[%s415 + $0x50] sm:$0xff]
  %v862 = vld [vmem:[%s415 + $0x58] sm:$0xff]
  %v863 = vld [vmem:[%s415 + $0x60] sm:$0xff]
  %v864 = vld [vmem:[%s415 + $0x68] sm:$0xff]
  %v865 = vld [vmem:[%s415 + $0x70] sm:$0xff]
  %v866 = vld [vmem:[%s415 + $0x78] sm:$0xff]
  %867 = vmatpush.msra.mxu0 %v866
  %868 = vmatpush.msra.mxu0 %v865
  %869 = vmatpush.msra.mxu0 %v864
  %870 = vmatpush.msra.mxu0 %v863
  %871 = vmatpush.msra.mxu0 %v862
  %872 = vmatpush.msra.mxu0 %v861
  %873 = vmatpush.msra.mxu0 %v860
  %874 = vmatpush.msra.mxu0 %v859
  %875 = vmatpush.msra.mxu0 %v858
  %876 = vmatpush.msra.mxu0 %v857
  %877 = vmatpush.msra.mxu0 %v856
  %878 = vmatpush.msra.mxu0 %v855
  %879 = vmatpush.msra.mxu0 %v854
  %880 = vmatpush.msra.mxu0 %v853
  %881 = vmatpush.msra.mxu0 %v852
  %882 = vmatpush.msra.mxu0 %v851
  %883 = vmatmul.f32.gmra.mxu0 %v850
  %v884 = vpop.f32.mrf.mxu0
  %v885 = vadd.f32 0.0, %v884
  %886 = vdwg.mxu0
  %v887 = vadd.f32 %v848, %v885
  %v888 = vld [vmem:[%s6] sm:$0x1]
  %v890 = vperm.slane %v888, 0
  %v893 = vsel %vm460, %v887, 0
  %895 = vmatpush.msra.mxu0 0.0
  %896 = vmatpush.msra.mxu0 0.0
  %897 = vmatpush.msra.mxu0 0.0
  %898 = vmatpush.msra.mxu0 0.0
  %899 = vmatpush.msra.mxu0 0.0
  %900 = vmatpush.msra.mxu0 0.0
  %901 = vmatpush.msra.mxu0 0.0
  %902 = vmatpush.msra.mxu0 0.0
  %903 = vmatpush.msra.mxu0 0.0
  %904 = vmatpush.msra.mxu0 0.0
  %905 = vmatpush.msra.mxu0 0.0
  %906 = vmatpush.msra.mxu0 0.0
  %907 = vmatpush.msra.mxu0 0.0
  %908 = vmatpush.msra.mxu0 0.0
  %909 = vmatpush.msra.mxu0 0.0
  %910 = vmatpush.msra.mxu0 %v893
  %911 = vmatmul.f32.gmra.mxu0 %v458
  %v912 = vpop.f32.mrf.mxu0
  %v913 = vadd.f32 %v890, %v912
  %914 = vdwg.mxu0
  %v915 = vmax.f32 %v913, 0.0
  %s916 = scalar_lea.vmem %s9, 2
  %917 = vst [vmem:[%s916] sm:$0x3] %v915
  // Predicated region
  $region30: #{_lambda_.1} parent=0 // pred_check
    _
  $region31: #{_lambda_.1} parent=0 // pred_check_branch
    %919 = sbr.rel (0) target = $region33
  $region32: #{_lambda_.1} parent=0 // pred_region
    _
  $region33: #{_lambda_.1} parent=0 // pred_fallthru
    _
  // Predicated region
  $region34: #{_lambda_.1} parent=0 // pred_check
    _
  $region35: #{_lambda_.1} parent=0 // pred_check_branch
    %921 = sbr.rel (0) target = $region37
  $region36: #{_lambda_.1} parent=0 // pred_region
    _
  $region37: #{_lambda_.1} parent=0 // pred_fallthru
    _
  // Predicated region
  $region38: #{_lambda_.1} parent=0 // pred_check
    _
  $region39: #{_lambda_.1} parent=0 // pred_check_branch
    %923 = sbr.rel (0) target = $region41
  $region40: #{_lambda_.1} parent=0 // pred_region
    _
  $region41: #{_lambda_.1} parent=0 // pred_fallthru
    _
  // Predicated region
  $region42: #{_lambda_.1} parent=0 // pred_check
    _
  $region43: #{_lambda_.1} parent=0 // pred_check_branch
    %925 = sbr.rel (0) target = $region45
  $region44: #{_lambda_.1} parent=0 // pred_region
    _
  $region45: #{_lambda_.1} parent=0 // pred_fallthru
    _
  // Predicated region
  $region46: #{_lambda_.1} parent=0 // pred_check
    _
  $region47: #{_lambda_.1} parent=0 // pred_check_branch
    %927 = sbr.rel (0) target = $region49
  $region48: #{_lambda_.1} parent=0 // pred_region
    _
  $region49: #{_lambda_.1} parent=0 // pred_fallthru
    _
  // Predicated region
  $region50: #{_lambda_.1} parent=0 // pred_check
    _
  $region51: #{_lambda_.1} parent=0 // pred_check_branch
    %929 = sbr.rel (0) target = $region53
  $region52: #{_lambda_.1} parent=0 // pred_region
    _
  $region53: #{_lambda_.1} parent=0 // pred_fallthru
    _

</llo_original>
